<compile_context>
chip_gen: v6e
topology: v6e:2x2x1
jax: 0.10.0
libtpu: 0.0.40
codegen_flags: <defaults>
</compile_context>

<pallas_src>
import math
import functools

import jax
import jax.numpy as jnp
from jax import lax
from jax.experimental import pallas as pl
from jax.experimental.pallas import tpu as pltpu

_INV_SQRT2 = 1.0 / math.sqrt(2.0)

# DHW below this (or not a multiple of 128) goes through the plain-XLA path.
_MIN_PALLAS_TOKENS = 1024


def _gelu(h, approximate):
    if approximate:
        # tanh approx -> EUP slot (frees VALU); ~1e-3 rel deviation from torch.
        return jax.nn.gelu(h, approximate=True)
    return 0.5 * h * (1.0 + lax.erf(h * _INV_SQRT2))


def projector_kernel(x_ref, w1_ref, b1_ref, w2_ref, b2_ref, o_ref, *,
                     chunk, n_chunks, unroll, approximate):
    """One token tile: x (C, T) -> out (z_dim, T), tokens on the lane axis.

    The tile is processed in `chunk`-lane slices so the (hidden, chunk) f32
    intermediate stays in vregs (no VMEM round-trip for h).
    """
    w1 = w1_ref[...]                                  # (hidden, C)   resident
    w2 = w2_ref[...]                                  # (z_dim, hidden) resident
    b1 = b1_ref[...].astype(jnp.float32)              # (hidden, 1)
    b2 = b2_ref[...].astype(jnp.float32)              # (z_dim, 1)

    def compute(start):
        x = x_ref[:, pl.ds(start, chunk)]             # (C, chunk)
        # fc_hid: (hidden, C) @ (C, chunk) -> (hidden, chunk), f32 accumulation
        h = jnp.dot(w1, x, preferred_element_type=jnp.float32) + b1
        h = _gelu(h, approximate)
        # fc_last: (z_dim, hidden) @ (hidden, chunk) -> (z_dim, chunk)
        z = jnp.dot(w2, h, preferred_element_type=jnp.float32) + b2
        o_ref[:, pl.ds(start, chunk)] = z.astype(o_ref.dtype)

    if n_chunks == 1:
        compute(0)
    else:
        def body(i, carry):
            compute(pl.multiple_of(i * chunk, chunk))
            return carry
        lax.fori_loop(0, n_chunks, body, 0, unroll=unroll)


def _pick_token_tile(dhw, batch, max_tokens):
    """Largest multiple of 128 that divides dhw, <= max_tokens.

    When batch == 1 we also try to keep >= 2 grid steps so both v7x
    TensorCores get work.
    """
    target = min(dhw, max_tokens)
    if batch < 2 and dhw >= 256:
        target = min(target, dhw // 2)
    best = 128
    t = 128
    while t <= target:
        if dhw % t == 0:
            best = t
        t += 128
    return best


def _xla_forward(x3d, w1, b1, w2, b2, approximate):
    """Plain-XLA path for small / unaligned spatial extents."""
    xf = x3d.astype(jnp.float32)
    h = jnp.einsum("oc,bct->bot", w1.astype(jnp.float32), xf)
    h = h + b1.astype(jnp.float32)[None, :, None]
    h = _gelu(h, approximate)
    z = jnp.einsum("oh,bht->bot", w2.astype(jnp.float32), h)
    z = z + b2.astype(jnp.float32)[None, :, None]
    return z.astype(x3d.dtype)


@functools.partial(jax.jit, static_argnames=("max_tokens", "approximate"))
def projector_forward(x_ncdhw, w1, b1, w2, b2, *, max_tokens=32768,
                      approximate=False):
    """x_ncdhw: (B, C, D, H, W); w1: (hidden, C); b1: (hidden,);
    w2: (z_dim, hidden); b2: (z_dim,).  Returns (B, z_dim*D*H*W)."""
    B, C, D, H, W = x_ncdhw.shape
    hidden = w1.shape[0]
    z_dim = w2.shape[0]
    DHW = D * H * W

    # Free reshape of the contiguous NCDHW tensor: tokens -> last (lane) axis.
    x3d = x_ncdhw.reshape(B, C, DHW)

    # Small / unaligned spatial extent: a Pallas launch is pure overhead and
    # the narrow output tiles would hit masked partial stores; use XLA.
    if DHW < _MIN_PALLAS_TOKENS or DHW % 128 != 0:
        out = _xla_forward(x3d, w1, b1, w2, b2, approximate)
        return out.reshape(B, -1)

    # Token tile: largest lane-dense divisor of DHW within the budget.
    T = _pick_token_tile(DHW, B, max_tokens)
    n_tiles = DHW // T

    # In-kernel lane chunk: keep the (hidden, chunk) f32 intermediate in vregs.
    chunk = max(c for c in (512, 256, 128) if T % c == 0)
    n_chunks = T // chunk
    unroll = True if n_chunks <= 8 else 8

    itemsize = jnp.dtype(x_ncdhw.dtype).itemsize
    cost = pl.CostEstimate(
        flops=2 * B * DHW * (hidden * C + z_dim * hidden),
        transcendentals=B * DHW * hidden,
        bytes_accessed=(B * DHW * (C + z_dim)
                        + hidden * C + hidden + z_dim * hidden + z_dim) * itemsize,
    )

    kernel = functools.partial(projector_kernel, chunk=chunk, n_chunks=n_chunks,
                               unroll=unroll, approximate=approximate)

    out = pl.pallas_call(
        kernel,
        out_shape=jax.ShapeDtypeStruct((B, z_dim, DHW), x_ncdhw.dtype),
        grid_spec=pltpu.PrefetchScalarGridSpec(
            num_scalar_prefetch=0,
            grid=(B, n_tiles),
            in_specs=[
                pl.BlockSpec((None, C, T), lambda b, t: (b, 0, t)),   # x tile
                pl.BlockSpec((hidden, C), lambda b, t: (0, 0)),       # W1 (resident)
                pl.BlockSpec((hidden, 1), lambda b, t: (0, 0)),       # b1
                pl.BlockSpec((z_dim, hidden), lambda b, t: (0, 0)),   # W2 (resident)
                pl.BlockSpec((z_dim, 1), lambda b, t: (0, 0)),        # b2
            ],
            out_specs=pl.BlockSpec((None, z_dim, T), lambda b, t: (b, 0, t)),
        ),
        compiler_params=pltpu.CompilerParams(
            dimension_semantics=("parallel", "parallel"),
            vmem_limit_bytes=32 * 1024 * 1024,
        ),
        cost_estimate=cost,
    )(x3d, w1, b1.reshape(hidden, 1), w2, b2.reshape(z_dim, 1))

    # (B, z_dim, DHW) is already PyTorch's (B, z_dim, D, H, W) memory order,
    # so the final .view(B, -1) is a free reshape.
    return out.reshape(B, -1)


def _reference(x_ncdhw, w1, b1, w2, b2):
    """Plain-JAX reference of the same forward pass (for validation)."""
    B = x_ncdhw.shape[0]
    x = x_ncdhw.reshape(B, x_ncdhw.shape[1], -1).astype(jnp.float32)   # (B, C, DHW)
    h = jnp.einsum("oc,bct->bot", w1.astype(jnp.float32), x) + b1[None, :, None]
    h = 0.5 * h * (1.0 + lax.erf(h / jnp.sqrt(2.0)))
    z = jnp.einsum("oh,bht->bot", w2.astype(jnp.float32), h) + b2[None, :, None]
    return z.reshape(B, -1).astype(x_ncdhw.dtype)


if __name__ == "__main__":
    # Shapes consistent with the module: in_channels=4, hidden=32, z_dim=8.
    # DHW = 8*16*16 = 2048 (multiple of 128) -> exercises the Pallas path.
    B, C, D, H, W = 2, 4, 8, 16, 16
    hidden, z_dim = 32, 8

    key = jax.random.PRNGKey(0)
    kx, kw1, kb1, kw2, kb2, kx2 = jax.random.split(key, 6)

    x = jax.random.normal(kx, (B, C, D, H, W), dtype=jnp.float32)

    # Deterministic synthetic parameters (Conv3d(1,1,1) kernels squeezed to 2-D)
    bound1 = 1.0 / math.sqrt(C)
    w1 = jax.random.uniform(kw1, (hidden, C), jnp.float32, -bound1, bound1)
    b1 = jax.random.uniform(kb1, (hidden,), jnp.float32, -bound1, bound1)
    bound2 = 1.0 / math.sqrt(hidden)
    w2 = jax.random.uniform(kw2, (z_dim, hidden), jnp.float32, -bound2, bound2)
    b2 = jax.random.uniform(kb2, (z_dim,), jnp.float32, -bound2, bound2)

    # Pallas path
    z = projector_forward(x, w1, b1, w2, b2)
    jax.block_until_ready(z)
    z_ref = _reference(x, w1, b1, w2, b2)
    assert z.shape == (B, z_dim * D * H * W), z.shape
    assert jnp.allclose(z, z_ref, atol=1e-5, rtol=1e-5)

    # Tiny spatial extent (DHW = 32) -> plain-XLA fallback path.
    x_small = jax.random.normal(kx2, (B, C, 2, 4, 4), dtype=jnp.float32)
    z_small = projector_forward(x_small, w1, b1, w2, b2)
    jax.block_until_ready(z_small)
    z_small_ref = _reference(x_small, w1, b1, w2, b2)
    assert z_small.shape == (B, z_dim * 2 * 4 * 4), z_small.shape
    assert jnp.allclose(z_small, z_small_ref, atol=1e-5, rtol=1e-5)

    print("KERNEL_OK")
</pallas_src>

<mosaic_0001>
module attributes {stable_mosaic.version = 11 : i64} {
  func.func @projector_kernel(%arg0: i32, %arg1: i32, %arg2: memref<1x4x2048xf32, #tpu.memory_space<vmem>>, %arg3: memref<32x4xf32, #tpu.memory_space<vmem>>, %arg4: memref<32x1xf32, #tpu.memory_space<vmem>>, %arg5: memref<8x32xf32, #tpu.memory_space<vmem>>, %arg6: memref<8x1xf32, #tpu.memory_space<vmem>>, %arg7: memref<1x8x2048xf32, #tpu.memory_space<vmem>>) attributes {dimension_semantics = [#tpu.dimension_semantics<parallel>, #tpu.dimension_semantics<parallel>], iteration_bounds = array<i64: 2, 1>, scalar_prefetch = 0 : i64, scratch_operands = 0 : i64, tpu.core_type = #tpu.core_type<tc>, window_params = [{transform_indices = @transform_0, window_bounds = array<i64: 1, 4, 2048>}, {pipeline_mode = #tpu.pipeline_mode<synchronous>, transform_indices = @transform_1, window_bounds = array<i64: 32, 4>}, {pipeline_mode = #tpu.pipeline_mode<synchronous>, transform_indices = @transform_2, window_bounds = array<i64: 32, 1>}, {pipeline_mode = #tpu.pipeline_mode<synchronous>, transform_indices = @transform_3, window_bounds = array<i64: 8, 32>}, {pipeline_mode = #tpu.pipeline_mode<synchronous>, transform_indices = @transform_4, window_bounds = array<i64: 8, 1>}, {transform_indices = @transform_5, window_bounds = array<i64: 1, 8, 2048>}]} {
    %c0 = arith.constant 0 : index
    %c0_0 = arith.constant 0 : index
    %0 = vector.load %arg3[%c0, %c0_0] : memref<32x4xf32, #tpu.memory_space<vmem>>, vector<32x4xf32>
    %c0_1 = arith.constant 0 : index
    %c0_2 = arith.constant 0 : index
    %1 = vector.load %arg5[%c0_1, %c0_2] : memref<8x32xf32, #tpu.memory_space<vmem>>, vector<8x32xf32>
    %c0_3 = arith.constant 0 : index
    %c0_4 = arith.constant 0 : index
    %2 = vector.load %arg4[%c0_3, %c0_4] : memref<32x1xf32, #tpu.memory_space<vmem>>, vector<32x1xf32>
    %c0_5 = arith.constant 0 : index
    %c0_6 = arith.constant 0 : index
    %3 = vector.load %arg6[%c0_5, %c0_6] : memref<8x1xf32, #tpu.memory_space<vmem>>, vector<8x1xf32>
    %c0_i32 = arith.constant 0 : i32
    %c512_i32 = arith.constant 512 : i32
    %4 = arith.muli %c0_i32, %c512_i32 : i32
    %5 = tpu.assume_multiple %4, 512 : i32
    %c0_7 = arith.constant 0 : index
    %c0_8 = arith.constant 0 : index
    %6 = arith.index_cast %5 : i32 to index
    %7 = vector.load %arg2[%c0_7, %c0_8, %6] : memref<1x4x2048xf32, #tpu.memory_space<vmem>>, vector<1x4x512xf32>
    %8 = vector.shape_cast %7 : vector<1x4x512xf32> to vector<4x512xf32>
    %cst = arith.constant dense<0.000000e+00> : vector<32x512xf32>
    %9 = tpu.matmul %0, %8, %cst {dimension_numbers = #tpu.dot_dimension_numbers<[1], [0], [0], [1], [0, 0, 1, 1], [], []>} : vector<32x4xf32>, vector<4x512xf32>, vector<32x512xf32> -> vector<32x512xf32>
    %10 = vector.broadcast %2 : vector<32x1xf32> to vector<32x512xf32>
    %11 = arith.addf %9, %10 : vector<32x512xf32>
    %cst_9 = arith.constant 5.000000e-01 : f32
    %12 = vector.broadcast %cst_9 : f32 to vector<32x512xf32>
    %13 = arith.mulf %12, %11 : vector<32x512xf32>
    %cst_10 = arith.constant 0.707106769 : f32
    %14 = vector.broadcast %cst_10 : f32 to vector<32x512xf32>
    %15 = arith.mulf %11, %14 : vector<32x512xf32>
    %16 = math.erf %15 : vector<32x512xf32>
    %cst_11 = arith.constant 1.000000e+00 : f32
    %17 = vector.broadcast %cst_11 : f32 to vector<32x512xf32>
    %18 = arith.addf %17, %16 : vector<32x512xf32>
    %19 = arith.mulf %13, %18 : vector<32x512xf32>
    %cst_12 = arith.constant dense<0.000000e+00> : vector<8x512xf32>
    %20 = tpu.matmul %1, %19, %cst_12 {dimension_numbers = #tpu.dot_dimension_numbers<[1], [0], [0], [1], [0, 0, 1, 1], [], []>} : vector<8x32xf32>, vector<32x512xf32>, vector<8x512xf32> -> vector<8x512xf32>
    %21 = vector.broadcast %3 : vector<8x1xf32> to vector<8x512xf32>
    %22 = arith.addf %20, %21 : vector<8x512xf32>
    %c0_13 = arith.constant 0 : index
    %c0_14 = arith.constant 0 : index
    %23 = arith.index_cast %5 : i32 to index
    %24 = vector.load %arg7[%c0_13, %c0_14, %23] : memref<1x8x2048xf32, #tpu.memory_space<vmem>>, vector<1x8x512xf32>
    %25 = vector.shape_cast %24 : vector<1x8x512xf32> to vector<8x512xf32>
    %26 = vector.shape_cast %22 : vector<8x512xf32> to vector<1x8x512xf32>
    tpu.vector_store %arg7[%c0_13, %c0_14, %23], %26 {strides = array<i32>} : memref<1x8x2048xf32, #tpu.memory_space<vmem>>, vector<1x8x512xf32>,
    %c1_i32 = arith.constant 1 : i32
    %c512_i32_15 = arith.constant 512 : i32
    %27 = arith.muli %c1_i32, %c512_i32_15 : i32
    %28 = tpu.assume_multiple %27, 512 : i32
    %c0_16 = arith.constant 0 : index
    %c0_17 = arith.constant 0 : index
    %29 = arith.index_cast %28 : i32 to index
    %30 = vector.load %arg2[%c0_16, %c0_17, %29] : memref<1x4x2048xf32, #tpu.memory_space<vmem>>, vector<1x4x512xf32>
    %31 = vector.shape_cast %30 : vector<1x4x512xf32> to vector<4x512xf32>
    %cst_18 = arith.constant dense<0.000000e+00> : vector<32x512xf32>
    %32 = tpu.matmul %0, %31, %cst_18 {dimension_numbers = #tpu.dot_dimension_numbers<[1], [0], [0], [1], [0, 0, 1, 1], [], []>} : vector<32x4xf32>, vector<4x512xf32>, vector<32x512xf32> -> vector<32x512xf32>
    %33 = vector.broadcast %2 : vector<32x1xf32> to vector<32x512xf32>
    %34 = arith.addf %32, %33 : vector<32x512xf32>
    %cst_19 = arith.constant 5.000000e-01 : f32
    %35 = vector.broadcast %cst_19 : f32 to vector<32x512xf32>
    %36 = arith.mulf %35, %34 : vector<32x512xf32>
    %cst_20 = arith.constant 0.707106769 : f32
    %37 = vector.broadcast %cst_20 : f32 to vector<32x512xf32>
    %38 = arith.mulf %34, %37 : vector<32x512xf32>
    %39 = math.erf %38 : vector<32x512xf32>
    %cst_21 = arith.constant 1.000000e+00 : f32
    %40 = vector.broadcast %cst_21 : f32 to vector<32x512xf32>
    %41 = arith.addf %40, %39 : vector<32x512xf32>
    %42 = arith.mulf %36, %41 : vector<32x512xf32>
    %cst_22 = arith.constant dense<0.000000e+00> : vector<8x512xf32>
    %43 = tpu.matmul %1, %42, %cst_22 {dimension_numbers = #tpu.dot_dimension_numbers<[1], [0], [0], [1], [0, 0, 1, 1], [], []>} : vector<8x32xf32>, vector<32x512xf32>, vector<8x512xf32> -> vector<8x512xf32>
    %44 = vector.broadcast %3 : vector<8x1xf32> to vector<8x512xf32>
    %45 = arith.addf %43, %44 : vector<8x512xf32>
    %c0_23 = arith.constant 0 : index
    %c0_24 = arith.constant 0 : index
    %46 = arith.index_cast %28 : i32 to index
    %47 = vector.load %arg7[%c0_23, %c0_24, %46] : memref<1x8x2048xf32, #tpu.memory_space<vmem>>, vector<1x8x512xf32>
    %48 = vector.shape_cast %47 : vector<1x8x512xf32> to vector<8x512xf32>
    %49 = vector.shape_cast %45 : vector<8x512xf32> to vector<1x8x512xf32>
    tpu.vector_store %arg7[%c0_23, %c0_24, %46], %49 {strides = array<i32>} : memref<1x8x2048xf32, #tpu.memory_space<vmem>>, vector<1x8x512xf32>,
    %c2_i32 = arith.constant 2 : i32
    %c512_i32_25 = arith.constant 512 : i32
    %50 = arith.muli %c2_i32, %c512_i32_25 : i32
    %51 = tpu.assume_multiple %50, 512 : i32
    %c0_26 = arith.constant 0 : index
    %c0_27 = arith.constant 0 : index
    %52 = arith.index_cast %51 : i32 to index
    %53 = vector.load %arg2[%c0_26, %c0_27, %52] : memref<1x4x2048xf32, #tpu.memory_space<vmem>>, vector<1x4x512xf32>
    %54 = vector.shape_cast %53 : vector<1x4x512xf32> to vector<4x512xf32>
    %cst_28 = arith.constant dense<0.000000e+00> : vector<32x512xf32>
    %55 = tpu.matmul %0, %54, %cst_28 {dimension_numbers = #tpu.dot_dimension_numbers<[1], [0], [0], [1], [0, 0, 1, 1], [], []>} : vector<32x4xf32>, vector<4x512xf32>, vector<32x512xf32> -> vector<32x512xf32>
    %56 = vector.broadcast %2 : vector<32x1xf32> to vector<32x512xf32>
    %57 = arith.addf %55, %56 : vector<32x512xf32>
    %cst_29 = arith.constant 5.000000e-01 : f32
    %58 = vector.broadcast %cst_29 : f32 to vector<32x512xf32>
    %59 = arith.mulf %58, %57 : vector<32x512xf32>
    %cst_30 = arith.constant 0.707106769 : f32
    %60 = vector.broadcast %cst_30 : f32 to vector<32x512xf32>
    %61 = arith.mulf %57, %60 : vector<32x512xf32>
    %62 = math.erf %61 : vector<32x512xf32>
    %cst_31 = arith.constant 1.000000e+00 : f32
    %63 = vector.broadcast %cst_31 : f32 to vector<32x512xf32>
    %64 = arith.addf %63, %62 : vector<32x512xf32>
    %65 = arith.mulf %59, %64 : vector<32x512xf32>
    %cst_32 = arith.constant dense<0.000000e+00> : vector<8x512xf32>
    %66 = tpu.matmul %1, %65, %cst_32 {dimension_numbers = #tpu.dot_dimension_numbers<[1], [0], [0], [1], [0, 0, 1, 1], [], []>} : vector<8x32xf32>, vector<32x512xf32>, vector<8x512xf32> -> vector<8x512xf32>
    %67 = vector.broadcast %3 : vector<8x1xf32> to vector<8x512xf32>
    %68 = arith.addf %66, %67 : vector<8x512xf32>
    %c0_33 = arith.constant 0 : index
    %c0_34 = arith.constant 0 : index
    %69 = arith.index_cast %51 : i32 to index
    %70 = vector.load %arg7[%c0_33, %c0_34, %69] : memref<1x8x2048xf32, #tpu.memory_space<vmem>>, vector<1x8x512xf32>
    %71 = vector.shape_cast %70 : vector<1x8x512xf32> to vector<8x512xf32>
    %72 = vector.shape_cast %68 : vector<8x512xf32> to vector<1x8x512xf32>
    tpu.vector_store %arg7[%c0_33, %c0_34, %69], %72 {strides = array<i32>} : memref<1x8x2048xf32, #tpu.memory_space<vmem>>, vector<1x8x512xf32>,
    %c3_i32 = arith.constant 3 : i32
    %c512_i32_35 = arith.constant 512 : i32
    %73 = arith.muli %c3_i32, %c512_i32_35 : i32
    %74 = tpu.assume_multiple %73, 512 : i32
    %c0_36 = arith.constant 0 : index
    %c0_37 = arith.constant 0 : index
    %75 = arith.index_cast %74 : i32 to index
    %76 = vector.load %arg2[%c0_36, %c0_37, %75] : memref<1x4x2048xf32, #tpu.memory_space<vmem>>, vector<1x4x512xf32>
    %77 = vector.shape_cast %76 : vector<1x4x512xf32> to vector<4x512xf32>
    %cst_38 = arith.constant dense<0.000000e+00> : vector<32x512xf32>
    %78 = tpu.matmul %0, %77, %cst_38 {dimension_numbers = #tpu.dot_dimension_numbers<[1], [0], [0], [1], [0, 0, 1, 1], [], []>} : vector<32x4xf32>, vector<4x512xf32>, vector<32x512xf32> -> vector<32x512xf32>
    %79 = vector.broadcast %2 : vector<32x1xf32> to vector<32x512xf32>
    %80 = arith.addf %78, %79 : vector<32x512xf32>
    %cst_39 = arith.constant 5.000000e-01 : f32
    %81 = vector.broadcast %cst_39 : f32 to vector<32x512xf32>
    %82 = arith.mulf %81, %80 : vector<32x512xf32>
    %cst_40 = arith.constant 0.707106769 : f32
    %83 = vector.broadcast %cst_40 : f32 to vector<32x512xf32>
    %84 = arith.mulf %80, %83 : vector<32x512xf32>
    %85 = math.erf %84 : vector<32x512xf32>
    %cst_41 = arith.constant 1.000000e+00 : f32
    %86 = vector.broadcast %cst_41 : f32 to vector<32x512xf32>
    %87 = arith.addf %86, %85 : vector<32x512xf32>
    %88 = arith.mulf %82, %87 : vector<32x512xf32>
    %cst_42 = arith.constant dense<0.000000e+00> : vector<8x512xf32>
    %89 = tpu.matmul %1, %88, %cst_42 {dimension_numbers = #tpu.dot_dimension_numbers<[1], [0], [0], [1], [0, 0, 1, 1], [], []>} : vector<8x32xf32>, vector<32x512xf32>, vector<8x512xf32> -> vector<8x512xf32>
    %90 = vector.broadcast %3 : vector<8x1xf32> to vector<8x512xf32>
    %91 = arith.addf %89, %90 : vector<8x512xf32>
    %c0_43 = arith.constant 0 : index
    %c0_44 = arith.constant 0 : index
    %92 = arith.index_cast %74 : i32 to index
    %93 = vector.load %arg7[%c0_43, %c0_44, %92] : memref<1x8x2048xf32, #tpu.memory_space<vmem>>, vector<1x8x512xf32>
    %94 = vector.shape_cast %93 : vector<1x8x512xf32> to vector<8x512xf32>
    %95 = vector.shape_cast %91 : vector<8x512xf32> to vector<1x8x512xf32>
    tpu.vector_store %arg7[%c0_43, %c0_44, %92], %95 {strides = array<i32>} : memref<1x8x2048xf32, #tpu.memory_space<vmem>>, vector<1x8x512xf32>,
    %c4_i32 = arith.constant 4 : i32
    return
  }
  func.func @transform_0(%arg0: i32, %arg1: i32) -> (i32, i32, i32) {
    %c0_i32 = arith.constant 0 : i32
    %c0_i32_0 = arith.constant 0 : i32
    return %arg0, %c0_i32, %arg1 : i32, i32, i32
  }
  func.func @transform_1(%arg0: i32, %arg1: i32) -> (i32, i32) {
    %c0_i32 = arith.constant 0 : i32
    %c0_i32_0 = arith.constant 0 : i32
    %c0_i32_1 = arith.constant 0 : i32
    return %c0_i32, %c0_i32_0 : i32, i32
  }
  func.func @transform_2(%arg0: i32, %arg1: i32) -> (i32, i32) {
    %c0_i32 = arith.constant 0 : i32
    %c0_i32_0 = arith.constant 0 : i32
    %c0_i32_1 = arith.constant 0 : i32
    return %c0_i32, %c0_i32_0 : i32, i32
  }
  func.func @transform_3(%arg0: i32, %arg1: i32) -> (i32, i32) {
    %c0_i32 = arith.constant 0 : i32
    %c0_i32_0 = arith.constant 0 : i32
    %c0_i32_1 = arith.constant 0 : i32
    return %c0_i32, %c0_i32_0 : i32, i32
  }
  func.func @transform_4(%arg0: i32, %arg1: i32) -> (i32, i32) {
    %c0_i32 = arith.constant 0 : i32
    %c0_i32_0 = arith.constant 0 : i32
    %c0_i32_1 = arith.constant 0 : i32
    return %c0_i32, %c0_i32_0 : i32, i32
  }
  func.func @transform_5(%arg0: i32, %arg1: i32) -> (i32, i32, i32) {
    %c0_i32 = arith.constant 0 : i32
    %c0_i32_0 = arith.constant 0 : i32
    return %arg0, %c0_i32, %arg1 : i32, i32, i32
  }
}

</mosaic_0001>

<llo_original>
// kernel: projector_forward.1
$region0: #{projector_forward.1}
  #allocation0 [shape = 'u32[]', space=smem, size = 0x4, offset = 0x4, fixed_abs, tag = 'smem constant byte address 0x4 - core index']
  #allocation1 [shape = 'u32[144,128]{1,0:T(1,128)}', space=vmem, size = 0x12000, scoped, tag = 'internal scratch']
  %s0 = inlined_call_operand.vmem [shape: f32[2,4,2048], index: 0, kind: input, shape index: {}]
  %s1 = inlined_call_operand.vmem [shape: f32[32,4], index: 1, kind: input, shape index: {}]
  %s2 = inlined_call_operand.vmem [shape: f32[32,1], index: 2, kind: input, shape index: {}]
  %s3 = inlined_call_operand.vmem [shape: f32[8,32], index: 3, kind: input, shape index: {}]
  %s4 = inlined_call_operand.vmem [shape: f32[8,1], index: 4, kind: input, shape index: {}]
  %s5 = inlined_call_operand.vmem [shape: f32[2,8,2048], index: 5, kind: output, shape index: {}]
  %s6 = sld [smem:[#allocation0]]
  $region53: #{projector_forward.1} parent=0
    _
  %s8 = ssub.s32 1, %s6
  %s9 = scalar_select 0, %s8, %s6
  loop: start=0, step=1, limit=4
  $region2: #{projector_forward.1} parent=0 // loop_pre_header
    _
  $region3: #{projector_forward.1} parent=0 // loop_header
    %s11 = sphi 0, %s15
    %p12 = scmp.ge.s32.totalorder %s11, 4
    %s18 = sphi 0, %s30
    %s19 = sphi 0, %s26
    %s20 = sphi 0, %s18
    %s21 = sphi 0, %s19
    %s22 = sphi 0, %s20
    %s23 = sphi 0, %s21
    %s35 = sphi 0, %s37
    %s38 = sphi 0, %s35
    %s39 = sphi 0, %s38
    %s55 = sphi 0, %s39
    %s59 = sphi 0, %s59
    %s61 = sphi 0, %s59
    %s62 = sphi 0, %s61
    %s76 = sphi 0, %s62
    %s80 = sphi 0, %s80
    %s82 = sphi 0, %s80
    %s83 = sphi 0, %s82
    %s97 = sphi 0, %s83
    %s101 = sphi 0, %s101
    %s103 = sphi 0, %s101
    %s104 = sphi 0, %s103
    %s118 = sphi 0, %s104
    %s122 = sphi 0, %s122
    %s124 = sphi 0, %s122
    %s125 = sphi 0, %s124
    %s139 = sphi 0, %s125
    %s147 = sphi 0, %s149
    %s150 = sphi 0, %s147
    %s151 = sphi 0, %s150
    %s167 = sphi 0, %s151
  $region4: #{projector_forward.1} parent=0 // loop_header_branch
    %14 = sbr.rel (%p12) target = $region8
  $region5: #{projector_forward.1} parent=0 // loop_body
    %s16 = ssub.s32 %s11, 1
    %s17 = ssub.s32 %s11, 2
    %s24 = sadd.s32 1, %s19
    %p25 = scmp.ge.s32.totalorder %s24, 1
    %s26 = scalar_select %p25, 0, %s24
    %s27 = sadd.s32 1, %s18
    %s28 = scalar_select %p25, %s27, %s18
    %p29 = scmp.ge.s32.totalorder %s28, 2
    %s30 = scalar_select %p29, 0, %s28
    %s31 = ssub.s32 %s18, %s30
    %s32 = ssub.s32 %s19, %s26
    %s33 = sor.u32 %s31, %s32
    %p34 = scmp.eq.s32.totalorder %s33, 0
    %s36 = sadd.s32 %s35, 1
    %s37 = scalar_select %p34, %s35, %s36
    %p40 = pneg %p34
    %p41 = scmp.eq.s32.totalorder %s11, 1
    %p42 = por %p40, %p41
    %p43 = scmp.ne.s32.totalorder %s35, %s38
    %p44 = scmp.eq.s32.totalorder %s11, 0
    %p45 = por %p43, %p44
    %p46 = scmp.ne.s32.totalorder %s35, %s38
    %p47 = scmp.eq.s32.totalorder %s16, 1
    %p48 = por %p46, %p47
    %p49 = scmp.ne.s32.totalorder %s38, %s39
    %p50 = scmp.eq.s32.totalorder %s16, 0
    %p51 = por %p49, %p50
    %p52 = scmp.ne.s32.totalorder %s38, %s39
    %p53 = scmp.eq.s32.totalorder %s17, 1
    %p54 = por %p52, %p53
    %p56 = scmp.ne.s32.totalorder %s39, %s55
    %p57 = scmp.eq.s32.totalorder %s17, 0
    %p58 = por %p56, %p57
    %s60 = sadd.s32 %s59, 1
    %p63 = scmp.eq.s32.totalorder %s11, 1
    %p64 = scmp.ne.s32.totalorder %s59, %s61
    %p65 = scmp.eq.s32.totalorder %s11, 0
    %p66 = por %p64, %p65
    %p67 = scmp.ne.s32.totalorder %s59, %s61
    %p68 = scmp.eq.s32.totalorder %s16, 1
    %p69 = por %p67, %p68
    %p70 = scmp.ne.s32.totalorder %s61, %s62
    %p71 = scmp.eq.s32.totalorder %s16, 0
    %p72 = por %p70, %p71
    %p73 = scmp.ne.s32.totalorder %s61, %s62
    %p74 = scmp.eq.s32.totalorder %s17, 1
    %p75 = por %p73, %p74
    %p77 = scmp.ne.s32.totalorder %s62, %s76
    %p78 = scmp.eq.s32.totalorder %s17, 0
    %p79 = por %p77, %p78
    %s81 = sadd.s32 %s80, 1
    %p84 = scmp.eq.s32.totalorder %s11, 1
    %p85 = scmp.ne.s32.totalorder %s80, %s82
    %p86 = scmp.eq.s32.totalorder %s11, 0
    %p87 = por %p85, %p86
    %p88 = scmp.ne.s32.totalorder %s80, %s82
    %p89 = scmp.eq.s32.totalorder %s16, 1
    %p90 = por %p88, %p89
    %p91 = scmp.ne.s32.totalorder %s82, %s83
    %p92 = scmp.eq.s32.totalorder %s16, 0
    %p93 = por %p91, %p92
    %p94 = scmp.ne.s32.totalorder %s82, %s83
    %p95 = scmp.eq.s32.totalorder %s17, 1
    %p96 = por %p94, %p95
    %p98 = scmp.ne.s32.totalorder %s83, %s97
    %p99 = scmp.eq.s32.totalorder %s17, 0
    %p100 = por %p98, %p99
    %s102 = sadd.s32 %s101, 1
    %p105 = scmp.eq.s32.totalorder %s11, 1
    %p106 = scmp.ne.s32.totalorder %s101, %s103
    %p107 = scmp.eq.s32.totalorder %s11, 0
    %p108 = por %p106, %p107
    %p109 = scmp.ne.s32.totalorder %s101, %s103
    %p110 = scmp.eq.s32.totalorder %s16, 1
    %p111 = por %p109, %p110
    %p112 = scmp.ne.s32.totalorder %s103, %s104
    %p113 = scmp.eq.s32.totalorder %s16, 0
    %p114 = por %p112, %p113
    %p115 = scmp.ne.s32.totalorder %s103, %s104
    %p116 = scmp.eq.s32.totalorder %s17, 1
    %p117 = por %p115, %p116
    %p119 = scmp.ne.s32.totalorder %s104, %s118
    %p120 = scmp.eq.s32.totalorder %s17, 0
    %p121 = por %p119, %p120
    %s123 = sadd.s32 %s122, 1
    %p126 = scmp.eq.s32.totalorder %s11, 1
    %p127 = scmp.ne.s32.totalorder %s122, %s124
    %p128 = scmp.eq.s32.totalorder %s11, 0
    %p129 = por %p127, %p128
    %p130 = scmp.ne.s32.totalorder %s122, %s124
    %p131 = scmp.eq.s32.totalorder %s16, 1
    %p132 = por %p130, %p131
    %p133 = scmp.ne.s32.totalorder %s124, %s125
    %p134 = scmp.eq.s32.totalorder %s16, 0
    %p135 = por %p133, %p134
    %p136 = scmp.ne.s32.totalorder %s124, %s125
    %p137 = scmp.eq.s32.totalorder %s17, 1
    %p138 = por %p136, %p137
    %p140 = scmp.ne.s32.totalorder %s125, %s139
    %p141 = scmp.eq.s32.totalorder %s17, 0
    %p142 = por %p140, %p141
    %s143 = ssub.s32 %s18, %s30
    %s144 = ssub.s32 %s19, %s26
    %s145 = sor.u32 %s143, %s144
    %p146 = scmp.eq.s32.totalorder %s145, 0
    %s148 = sadd.s32 %s147, 1
    %s149 = scalar_select %p146, %s147, %s148
    %p152 = pneg %p146
    %p153 = scmp.eq.s32.totalorder %s11, 1
    %p154 = por %p152, %p153
    %p155 = scmp.ne.s32.totalorder %s147, %s150
    %p156 = scmp.eq.s32.totalorder %s11, 0
    %p157 = por %p155, %p156
    %p158 = scmp.ne.s32.totalorder %s147, %s150
    %p159 = scmp.eq.s32.totalorder %s16, 1
    %p160 = por %p158, %p159
    %p161 = scmp.ne.s32.totalorder %s150, %s151
    %p162 = scmp.eq.s32.totalorder %s16, 0
    %p163 = por %p161, %p162
    %p164 = scmp.ne.s32.totalorder %s150, %s151
    %p165 = scmp.eq.s32.totalorder %s17, 1
    %p166 = por %p164, %p165
    %p168 = scmp.ne.s32.totalorder %s151, %s167
    %p169 = scmp.eq.s32.totalorder %s17, 0
    %p170 = por %p168, %p169
    %p171 = scmp.le.s32.totalorder 1, %s11
    %p172 = scmp.lt.s32.totalorder %s11, 3
    %p173 = pnand %p171, %p172
    %p174 = pneg %p173
    // Predicated region
    $region9: #{projector_forward.1} parent=5 // pred_check
      _
    $region10: #{projector_forward.1} parent=5 // pred_check_branch
      %176 = sbr.rel (%p173) target = $region12
    $region11: #{projector_forward.1} parent=5 // pred_region
      %s177 = ssub.s32 %s11, 1
      // Predicated region
      $region13: #{projector_forward.1} parent=11 // pred_check
        %p178 = pneg %p72
      $region14: #{projector_forward.1} parent=11 // pred_check_branch
        %180 = sbr.rel (%p178) target = $region16
      $region15: #{projector_forward.1} parent=11 // pred_region
        _
      $region16: #{projector_forward.1} parent=11 // pred_fallthru
        _
      // Predicated region
      $region17: #{projector_forward.1} parent=11 // pred_check
        %p181 = pneg %p93
      $region18: #{projector_forward.1} parent=11 // pred_check_branch
        %183 = sbr.rel (%p181) target = $region20
      $region19: #{projector_forward.1} parent=11 // pred_region
        _
      $region20: #{projector_forward.1} parent=11 // pred_fallthru
        _
      // Predicated region
      $region21: #{projector_forward.1} parent=11 // pred_check
        %p184 = pneg %p114
      $region22: #{projector_forward.1} parent=11 // pred_check_branch
        %186 = sbr.rel (%p184) target = $region24
      $region23: #{projector_forward.1} parent=11 // pred_region
        _
      $region24: #{projector_forward.1} parent=11 // pred_fallthru
        _
      // Predicated region
      $region25: #{projector_forward.1} parent=11 // pred_check
        %p187 = pneg %p135
      $region26: #{projector_forward.1} parent=11 // pred_check_branch
        %189 = sbr.rel (%p187) target = $region28
      $region27: #{projector_forward.1} parent=11 // pred_region
        _
      $region28: #{projector_forward.1} parent=11 // pred_fallthru
        _
    $region12: #{projector_forward.1} parent=5 // pred_fallthru
      _
    %p190 = scmp.lt.s32.totalorder %s11, 2
    // Predicated region
    $region29: #{projector_forward.1} parent=5 // pred_check
      %p191 = pneg %p190
    $region30: #{projector_forward.1} parent=5 // pred_check_branch
      %193 = sbr.rel (%p191) target = $region32
    $region31: #{projector_forward.1} parent=5 // pred_region
      // Predicated region
      $region33: #{projector_forward.1} parent=31 // pred_check
        %p194 = pneg %p45
      $region34: #{projector_forward.1} parent=31 // pred_check_branch
        %196 = sbr.rel (%p194) target = $region36
      $region35: #{projector_forward.1} parent=31 // pred_region
        %s197 = smul.u32 16, %s19
        %p198 = scmp.lt.s32.totalorder %s18, 1
        %s199 = scalar_select %p198, %s18, 1
        %p200 = scmp.lt.s32.totalorder %s197, 15
        %s201 = scalar_select %p200, %s197, 15
        %s202 = smul.addr %s199, 16
        %s203 = sadd.s32 %s201, %s202
        %s204 = smul.addr %s203, 4
        %s205 = scalar_lea.vmem %s0, %s204
        %s206 = smul.u32 16, %s19
      $region36: #{projector_forward.1} parent=31 // pred_fallthru
        _
    $region32: #{projector_forward.1} parent=5 // pred_fallthru
      _
    %p207 = scmp.le.s32.totalorder 1, %s11
    %p208 = scmp.lt.s32.totalorder %s11, 3
    %p209 = pnand %p207, %p208
    %p210 = pneg %p209
    // Predicated region
    $region37: #{projector_forward.1} parent=5 // pred_check
      _
    $region38: #{projector_forward.1} parent=5 // pred_check_branch
      %212 = sbr.rel (%p209) target = $region40
    $region39: #{projector_forward.1} parent=5 // pred_region
      %s213 = ssub.s32 %s11, 1
      %s214 = smul.u32 16, %s21
      %p215 = scmp.lt.s32.totalorder %s20, 1
      %s216 = scalar_select %p215, %s20, 1
      %p217 = scmp.lt.s32.totalorder %s214, 15
      %s218 = scalar_select %p217, %s214, 15
      %s219 = smul.addr %s216, 16
      %s220 = sadd.s32 %s218, %s219
      %s221 = smul.addr %s220, 4
      %s222 = scalar_lea.vmem %s0, %s221
      %p223 = pneg %p51
      %p224 = pneg %p48
      %p225 = pneg %p72
      %p226 = pneg %p69
      %p227 = pneg %p93
      %p228 = pneg %p90
      %p229 = pneg %p114
      %p230 = pneg %p111
      %p231 = pneg %p135
      %p232 = pneg %p132
      %p233 = pneg %p163
      %p234 = pneg %p160
      %s235 = smul.u32 16, %s21
      %p236 = scmp.lt.s32.totalorder %s20, 1
      %s237 = scalar_select %p236, %s20, 1
      %p238 = scmp.lt.s32.totalorder %s235, 15
      %s239 = scalar_select %p238, %s235, 15
      %s240 = smul.addr %s237, 16
      %s241 = sadd.s32 %s239, %s240
      %s242 = smul.addr %s241, 8
      %s243 = scalar_lea.vmem %s5, %s242
      %s244 = smul.u32 16, %s21
      %p245 = scmp.lt.s32.totalorder %s20, 1
      %s246 = scalar_select %p245, %s20, 1
      %p247 = scmp.lt.s32.totalorder %s244, 15
      %s248 = scalar_select %p247, %s244, 15
      %s249 = smul.addr %s246, 16
      %s250 = sadd.s32 %s248, %s249
      %s251 = smul.addr %s250, 4
      %s252 = scalar_lea.vmem %s0, %s251
      %s253 = smul.u32 16, %s21
      %s254 = smul.u32 16, %s21
      %p255 = scmp.lt.s32.totalorder %s20, 1
      %s256 = scalar_select %p255, %s20, 1
      %p257 = scmp.lt.s32.totalorder %s254, 15
      %s258 = scalar_select %p257, %s254, 15
      %s259 = smul.addr %s256, 16
      %s260 = sadd.s32 %s258, %s259
      %s261 = smul.addr %s260, 8
      %s262 = scalar_lea.vmem %s5, %s261
      %s263 = smul.u32 16, %s21
      %v264 = vld [vmem:[%s1] sm:$0xff]
      %v265 = vld [vmem:[%s1 + $0x8] sm:$0xff]
      %v266 = vld [vmem:[%s1 + $0x10] sm:$0xff]
      %v267 = vld [vmem:[%s1 + $0x18] sm:$0xff]
      %v268 = vld [vmem:[%s3] sm:$0xff]
      %v269 = vld [vmem:[%s2] sm:$0xff]
      %v270 = vld [vmem:[%s2 + $0x8] sm:$0xff]
      %v271 = vld [vmem:[%s2 + $0x10] sm:$0xff]
      %v272 = vld [vmem:[%s2 + $0x18] sm:$0xff]
      %v273 = vld [vmem:[%s4] sm:$0xff]
      %v274 = vld [vmem:[%s252] sm:$0xff]
      %v275 = vld [vmem:[%s252 + $0x8] sm:$0xff]
      %277 = vset.pattern.permute.xlu0 0
      %278 = vperm.xlu0 %277, %v269
      %v279 = vpop.permute.xlu0 %278
      %282 = vset.pattern.permute.xlu0 0
      %283 = vperm.xlu0 %282, %v270
      %v284 = vpop.permute.xlu0 %283
      %287 = vset.pattern.permute.xlu0 0
      %288 = vperm.xlu0 %287, %v271
      %v289 = vpop.permute.xlu0 %288
      %292 = vset.pattern.permute.xlu0 0
      %293 = vperm.xlu0 %292, %v272
      %v294 = vpop.permute.xlu0 %293
      %v298 = vcombine.high %v274, %v274
      %v299 = vcombine.high %v275, %v275
      %vm300 = vcmask 31744
      %v302 = vsel %vm300, %v264, 0
      %v305 = vsel %vm300, %v265, 0
      %v308 = vsel %vm300, %v266, 0
      %v311 = vsel %vm300, %v267, 0
      %vm313 = vcmask 1043456
      %v314 = vsel %vm313, %v274, 0
      %v316 = vsel %vm313, %v298, 0
      %v318 = vsel %vm313, %v275, 0
      %v320 = vsel %vm313, %v299, 0
      %322 = vmatprep.subr.mxu0 0.0
      %323 = vmatpush1.msra.mxu0 0.0
      %324 = vmatprep.subr.mxu0 0.0
      %325 = vmatpush1.msra.mxu0 0.0
      %326 = vmatprep.subr.mxu0 0.0
      %327 = vmatpush1.msra.mxu0 0.0
      %328 = vmatprep.subr.mxu0 0.0
      %329 = vmatpush1.msra.mxu0 0.0
      %330 = vmatprep.subr.mxu0 0.0
      %331 = vmatpush1.msra.mxu0 0.0
      %332 = vmatprep.subr.mxu0 0.0
      %333 = vmatpush1.msra.mxu0 0.0
      %334 = vmatprep.subr.mxu0 0.0
      %335 = vmatpush1.msra.mxu0 0.0
      %336 = vmatprep.subr.mxu0 0.0
      %337 = vmatpush1.msra.mxu0 0.0
      %338 = vmatprep.subr.mxu0 0.0
      %339 = vmatpush1.msra.mxu0 0.0
      %340 = vmatprep.subr.mxu0 0.0
      %341 = vmatpush1.msra.mxu0 0.0
      %342 = vmatprep.subr.mxu0 0.0
      %343 = vmatpush1.msra.mxu0 0.0
      %344 = vmatprep.subr.mxu0 0.0
      %345 = vmatpush1.msra.mxu0 0.0
      %346 = vmatprep.subr.mxu0 0.0
      %347 = vmatpush1.msra.mxu0 0.0
      %348 = vmatprep.subr.mxu0 0.0
      %349 = vmatpush1.msra.mxu0 0.0
      %350 = vmatprep.subr.mxu0 0.0
      %351 = vmatpush1.msra.mxu0 0.0
      %352 = vmatprep.subr.mxu0 %v316
      %353 = vmatpush1.msra.mxu0 %v314
      %354 = vmatprep.subr.mxu0 0.0
      %355 = vmatpush2.msra.mxu0 0.0
      %356 = vmatprep.subr.mxu0 0.0
      %357 = vmatpush2.msra.mxu0 0.0
      %358 = vmatprep.subr.mxu0 0.0
      %359 = vmatpush2.msra.mxu0 0.0
      %360 = vmatprep.subr.mxu0 0.0
      %361 = vmatpush2.msra.mxu0 0.0
      %362 = vmatprep.subr.mxu0 0.0
      %363 = vmatpush2.msra.mxu0 0.0
      %364 = vmatprep.subr.mxu0 0.0
      %365 = vmatpush2.msra.mxu0 0.0
      %366 = vmatprep.subr.mxu0 0.0
      %367 = vmatpush2.msra.mxu0 0.0
      %368 = vmatprep.subr.mxu0 0.0
      %369 = vmatpush2.msra.mxu0 0.0
      %370 = vmatprep.subr.mxu0 0.0
      %371 = vmatpush2.msra.mxu0 0.0
      %372 = vmatprep.subr.mxu0 0.0
      %373 = vmatpush2.msra.mxu0 0.0
      %374 = vmatprep.subr.mxu0 0.0
      %375 = vmatpush2.msra.mxu0 0.0
      %376 = vmatprep.subr.mxu0 0.0
      %377 = vmatpush2.msra.mxu0 0.0
      %378 = vmatprep.subr.mxu0 0.0
      %379 = vmatpush2.msra.mxu0 0.0
      %380 = vmatprep.subr.mxu0 0.0
      %381 = vmatpush2.msra.mxu0 0.0
      %382 = vmatprep.subr.mxu0 0.0
      %383 = vmatpush2.msra.mxu0 0.0
      %384 = vmatprep.subr.mxu0 0.0
      %385 = vmatpush2.msra.mxu0 0.0
      %386 = vmatprep.mubr.f32.mxu0 0.0
      %387 = vmatmul.mubr.f32.gmra.mxu0 %v302
      %v388 = vpop.f32.mrf.mxu0
      %v389 = vadd.f32 %v279, %v388
      %v390 = vpop.f32.mrf.mxu0
      %v391 = vadd.f32 %v279, %v390
      %392 = vmatprep.mubr.f32.mxu0 0.0
      %393 = vmatmul.mubr.f32.gmra.mxu0 %v305
      %v394 = vpop.f32.mrf.mxu0
      %v395 = vadd.f32 %v284, %v394
      %v396 = vpop.f32.mrf.mxu0
      %v397 = vadd.f32 %v284, %v396
      %398 = vmatprep.mubr.f32.mxu0 0.0
      %399 = vmatmul.mubr.f32.gmra.mxu0 %v308
      %v400 = vpop.f32.mrf.mxu0
      %v401 = vadd.f32 %v289, %v400
      %v402 = vpop.f32.mrf.mxu0
      %v403 = vadd.f32 %v289, %v402
      %404 = vmatprep.mubr.f32.mxu0 0.0
      %405 = vmatmul.mubr.f32.gmra.mxu0 %v311
      %v406 = vpop.f32.mrf.mxu0
      %v407 = vadd.f32 %v294, %v406
      %v408 = vpop.f32.mrf.mxu0
      %v409 = vadd.f32 %v294, %v408
      %410 = vdwg.mxu0
      %411 = vmatprep.subr.mxu0 0.0
      %412 = vmatpush1.msra.mxu0 0.0
      %413 = vmatprep.subr.mxu0 0.0
      %414 = vmatpush1.msra.mxu0 0.0
      %415 = vmatprep.subr.mxu0 0.0
      %416 = vmatpush1.msra.mxu0 0.0
      %417 = vmatprep.subr.mxu0 0.0
      %418 = vmatpush1.msra.mxu0 0.0
      %419 = vmatprep.subr.mxu0 0.0
      %420 = vmatpush1.msra.mxu0 0.0
      %421 = vmatprep.subr.mxu0 0.0
      %422 = vmatpush1.msra.mxu0 0.0
      %423 = vmatprep.subr.mxu0 0.0
      %424 = vmatpush1.msra.mxu0 0.0
      %425 = vmatprep.subr.mxu0 0.0
      %426 = vmatpush1.msra.mxu0 0.0
      %427 = vmatprep.subr.mxu0 0.0
      %428 = vmatpush1.msra.mxu0 0.0
      %429 = vmatprep.subr.mxu0 0.0
      %430 = vmatpush1.msra.mxu0 0.0
      %431 = vmatprep.subr.mxu0 0.0
      %432 = vmatpush1.msra.mxu0 0.0
      %433 = vmatprep.subr.mxu0 0.0
      %434 = vmatpush1.msra.mxu0 0.0
      %435 = vmatprep.subr.mxu0 0.0
      %436 = vmatpush1.msra.mxu0 0.0
      %437 = vmatprep.subr.mxu0 0.0
      %438 = vmatpush1.msra.mxu0 0.0
      %439 = vmatprep.subr.mxu0 0.0
      %440 = vmatpush1.msra.mxu0 0.0
      %441 = vmatprep.subr.mxu0 %v320
      %442 = vmatpush1.msra.mxu0 %v318
      %443 = vmatprep.subr.mxu0 0.0
      %444 = vmatpush2.msra.mxu0 0.0
      %445 = vmatprep.subr.mxu0 0.0
      %446 = vmatpush2.msra.mxu0 0.0
      %447 = vmatprep.subr.mxu0 0.0
      %448 = vmatpush2.msra.mxu0 0.0
      %449 = vmatprep.subr.mxu0 0.0
      %450 = vmatpush2.msra.mxu0 0.0
      %451 = vmatprep.subr.mxu0 0.0
      %452 = vmatpush2.msra.mxu0 0.0
      %453 = vmatprep.subr.mxu0 0.0
      %454 = vmatpush2.msra.mxu0 0.0
      %455 = vmatprep.subr.mxu0 0.0
      %456 = vmatpush2.msra.mxu0 0.0
      %457 = vmatprep.subr.mxu0 0.0
      %458 = vmatpush2.msra.mxu0 0.0
      %459 = vmatprep.subr.mxu0 0.0
      %460 = vmatpush2.msra.mxu0 0.0
      %461 = vmatprep.subr.mxu0 0.0
      %462 = vmatpush2.msra.mxu0 0.0
      %463 = vmatprep.subr.mxu0 0.0
      %464 = vmatpush2.msra.mxu0 0.0
      %465 = vmatprep.subr.mxu0 0.0
      %466 = vmatpush2.msra.mxu0 0.0
      %467 = vmatprep.subr.mxu0 0.0
      %468 = vmatpush2.msra.mxu0 0.0
      %469 = vmatprep.subr.mxu0 0.0
      %470 = vmatpush2.msra.mxu0 0.0
      %471 = vmatprep.subr.mxu0 0.0
      %472 = vmatpush2.msra.mxu0 0.0
      %473 = vmatprep.subr.mxu0 0.0
      %474 = vmatpush2.msra.mxu0 0.0
      %475 = vmatprep.mubr.f32.mxu0 0.0
      %476 = vmatmul.mubr.f32.gmra.mxu0 %v302
      %v477 = vpop.f32.mrf.mxu0
      %v478 = vadd.f32 %v279, %v477
      %v479 = vpop.f32.mrf.mxu0
      %v480 = vadd.f32 %v279, %v479
      %481 = vmatprep.mubr.f32.mxu0 0.0
      %482 = vmatmul.mubr.f32.gmra.mxu0 %v305
      %v483 = vpop.f32.mrf.mxu0
      %v484 = vadd.f32 %v284, %v483
      %v485 = vpop.f32.mrf.mxu0
      %v486 = vadd.f32 %v284, %v485
      %487 = vmatprep.mubr.f32.mxu0 0.0
      %488 = vmatmul.mubr.f32.gmra.mxu0 %v308
      %v489 = vpop.f32.mrf.mxu0
      %v490 = vadd.f32 %v289, %v489
      %v491 = vpop.f32.mrf.mxu0
      %v492 = vadd.f32 %v289, %v491
      %493 = vmatprep.mubr.f32.mxu0 0.0
      %494 = vmatmul.mubr.f32.gmra.mxu0 %v311
      %v495 = vpop.f32.mrf.mxu0
      %v496 = vadd.f32 %v294, %v495
      %v497 = vpop.f32.mrf.mxu0
      %v498 = vadd.f32 %v294, %v497
      %499 = vdwg.mxu0
      %v500 = vmul.f32 %v389, 0.5
      %v501 = vmul.f32 %v391, 0.5
      %v502 = vmul.f32 %v478, 0.5
      %v503 = vmul.f32 %v480, 0.5
      %v504 = vmul.f32 %v395, 0.5
      %v505 = vmul.f32 %v397, 0.5
      %v506 = vmul.f32 %v484, 0.5
      %v507 = vmul.f32 %v486, 0.5
      %v508 = vmul.f32 %v401, 0.5
      %v509 = vmul.f32 %v403, 0.5
      %v510 = vmul.f32 %v490, 0.5
      %v511 = vmul.f32 %v492, 0.5
      %v512 = vmul.f32 %v407, 0.5
      %v513 = vmul.f32 %v409, 0.5
      %v514 = vmul.f32 %v496, 0.5
      %v515 = vmul.f32 %v498, 0.5
      %v516 = vmul.f32 %v389, 0.70710677
      %v517 = vmul.f32 %v391, 0.70710677
      %v518 = vmul.f32 %v478, 0.70710677
      %v519 = vmul.f32 %v480, 0.70710677
      %v520 = vmul.f32 %v395, 0.70710677
      %v521 = vmul.f32 %v397, 0.70710677
      %v522 = vmul.f32 %v484, 0.70710677
      %v523 = vmul.f32 %v486, 0.70710677
      %v524 = vmul.f32 %v401, 0.70710677
      %v525 = vmul.f32 %v403, 0.70710677
      %v526 = vmul.f32 %v490, 0.70710677
      %v527 = vmul.f32 %v492, 0.70710677
      %v528 = vmul.f32 %v407, 0.70710677
      %v529 = vmul.f32 %v409, 0.70710677
      %v530 = vmul.f32 %v496, 0.70710677
      %v531 = vmul.f32 %v498, 0.70710677
      %v532 = verf.f32.pop %v516
      %v533 = verf.f32.pop %v517
      %v534 = verf.f32.pop %v518
      %v535 = verf.f32.pop %v519
      %v536 = verf.f32.pop %v520
      %v537 = verf.f32.pop %v521
      %v538 = verf.f32.pop %v522
      %v539 = verf.f32.pop %v523
      %v540 = verf.f32.pop %v524
      %v541 = verf.f32.pop %v525
      %v542 = verf.f32.pop %v526
      %v543 = verf.f32.pop %v527
      %v544 = verf.f32.pop %v528
      %v545 = verf.f32.pop %v529
      %v546 = verf.f32.pop %v530
      %v547 = verf.f32.pop %v531
      %v548 = vadd.f32 %v532, 1.0
      %v549 = vadd.f32 %v533, 1.0
      %v550 = vadd.f32 %v534, 1.0
      %v551 = vadd.f32 %v535, 1.0
      %v552 = vadd.f32 %v536, 1.0
      %v553 = vadd.f32 %v537, 1.0
      %v554 = vadd.f32 %v538, 1.0
      %v555 = vadd.f32 %v539, 1.0
      %v556 = vadd.f32 %v540, 1.0
      %v557 = vadd.f32 %v541, 1.0
      %v558 = vadd.f32 %v542, 1.0
      %v559 = vadd.f32 %v543, 1.0
      %v560 = vadd.f32 %v544, 1.0
      %v561 = vadd.f32 %v545, 1.0
      %v562 = vadd.f32 %v546, 1.0
      %v563 = vadd.f32 %v547, 1.0
      %v564 = vmul.f32 %v500, %v548
      %v565 = vmul.f32 %v501, %v549
      %v566 = vmul.f32 %v502, %v550
      %v567 = vmul.f32 %v503, %v551
      %v568 = vmul.f32 %v504, %v552
      %v569 = vmul.f32 %v505, %v553
      %v570 = vmul.f32 %v506, %v554
      %v571 = vmul.f32 %v507, %v555
      %v572 = vmul.f32 %v508, %v556
      %v573 = vmul.f32 %v509, %v557
      %v574 = vmul.f32 %v510, %v558
      %v575 = vmul.f32 %v511, %v559
      %v576 = vmul.f32 %v512, %v560
      %v577 = vmul.f32 %v513, %v561
      %v578 = vmul.f32 %v514, %v562
      %v579 = vmul.f32 %v515, %v563
      %581 = vset.pattern.permute.xlu0 0
      %582 = vperm.xlu0 %581, %v273
      %v583 = vpop.permute.xlu0 %582
      %vm585 = vcmask 261120
      %v587 = vsel %vm585, %v268, 0
      %589 = vmatprep.subr.mxu0 0.0
      %590 = vmatpush1.msra.mxu0 0.0
      %591 = vmatprep.subr.mxu0 0.0
      %592 = vmatpush1.msra.mxu0 0.0
      %593 = vmatprep.subr.mxu0 0.0
      %594 = vmatpush1.msra.mxu0 0.0
      %595 = vmatprep.subr.mxu0 0.0
      %596 = vmatpush1.msra.mxu0 0.0
      %597 = vmatprep.subr.mxu0 0.0
      %598 = vmatpush1.msra.mxu0 0.0
      %599 = vmatprep.subr.mxu0 0.0
      %600 = vmatpush1.msra.mxu0 0.0
      %601 = vmatprep.subr.mxu0 0.0
      %602 = vmatpush1.msra.mxu0 0.0
      %603 = vmatprep.subr.mxu0 0.0
      %604 = vmatpush1.msra.mxu0 0.0
      %605 = vmatprep.subr.mxu0 0.0
      %606 = vmatpush1.msra.mxu0 0.0
      %607 = vmatprep.subr.mxu0 0.0
      %608 = vmatpush1.msra.mxu0 0.0
      %609 = vmatprep.subr.mxu0 0.0
      %610 = vmatpush1.msra.mxu0 0.0
      %611 = vmatprep.subr.mxu0 0.0
      %612 = vmatpush1.msra.mxu0 0.0
      %613 = vmatprep.subr.mxu0 %v577
      %614 = vmatpush1.msra.mxu0 %v576
      %615 = vmatprep.subr.mxu0 %v573
      %616 = vmatpush1.msra.mxu0 %v572
      %617 = vmatprep.subr.mxu0 %v569
      %618 = vmatpush1.msra.mxu0 %v568
      %619 = vmatprep.subr.mxu0 %v565
      %620 = vmatpush1.msra.mxu0 %v564
      %621 = vmatprep.subr.mxu0 0.0
      %622 = vmatpush2.msra.mxu0 0.0
      %623 = vmatprep.subr.mxu0 0.0
      %624 = vmatpush2.msra.mxu0 0.0
      %625 = vmatprep.subr.mxu0 0.0
      %626 = vmatpush2.msra.mxu0 0.0
      %627 = vmatprep.subr.mxu0 0.0
      %628 = vmatpush2.msra.mxu0 0.0
      %629 = vmatprep.subr.mxu0 0.0
      %630 = vmatpush2.msra.mxu0 0.0
      %631 = vmatprep.subr.mxu0 0.0
      %632 = vmatpush2.msra.mxu0 0.0
      %633 = vmatprep.subr.mxu0 0.0
      %634 = vmatpush2.msra.mxu0 0.0
      %635 = vmatprep.subr.mxu0 0.0
      %636 = vmatpush2.msra.mxu0 0.0
      %637 = vmatprep.subr.mxu0 0.0
      %638 = vmatpush2.msra.mxu0 0.0
      %639 = vmatprep.subr.mxu0 0.0
      %640 = vmatpush2.msra.mxu0 0.0
      %641 = vmatprep.subr.mxu0 0.0
      %642 = vmatpush2.msra.mxu0 0.0
      %643 = vmatprep.subr.mxu0 0.0
      %644 = vmatpush2.msra.mxu0 0.0
      %645 = vmatprep.subr.mxu0 0.0
      %646 = vmatpush2.msra.mxu0 0.0
      %647 = vmatprep.subr.mxu0 0.0
      %648 = vmatpush2.msra.mxu0 0.0
      %649 = vmatprep.subr.mxu0 0.0
      %650 = vmatpush2.msra.mxu0 0.0
      %651 = vmatprep.subr.mxu0 0.0
      %652 = vmatpush2.msra.mxu0 0.0
      %653 = vmatprep.mubr.f32.mxu0 0.0
      %654 = vmatmul.mubr.f32.gmra.mxu0 %v587
      %v655 = vpop.f32.mrf.mxu0
      %v656 = vadd.f32 %v583, %v655
      %v657 = vpop.f32.mrf.mxu0
      %v658 = vadd.f32 %v583, %v657
      %659 = vdwg.mxu0
      %660 = vmatprep.subr.mxu0 0.0
      %661 = vmatpush1.msra.mxu0 0.0
      %662 = vmatprep.subr.mxu0 0.0
      %663 = vmatpush1.msra.mxu0 0.0
      %664 = vmatprep.subr.mxu0 0.0
      %665 = vmatpush1.msra.mxu0 0.0
      %666 = vmatprep.subr.mxu0 0.0
      %667 = vmatpush1.msra.mxu0 0.0
      %668 = vmatprep.subr.mxu0 0.0
      %669 = vmatpush1.msra.mxu0 0.0
      %670 = vmatprep.subr.mxu0 0.0
      %671 = vmatpush1.msra.mxu0 0.0
      %672 = vmatprep.subr.mxu0 0.0
      %673 = vmatpush1.msra.mxu0 0.0
      %674 = vmatprep.subr.mxu0 0.0
      %675 = vmatpush1.msra.mxu0 0.0
      %676 = vmatprep.subr.mxu0 0.0
      %677 = vmatpush1.msra.mxu0 0.0
      %678 = vmatprep.subr.mxu0 0.0
      %679 = vmatpush1.msra.mxu0 0.0
      %680 = vmatprep.subr.mxu0 0.0
      %681 = vmatpush1.msra.mxu0 0.0
      %682 = vmatprep.subr.mxu0 0.0
      %683 = vmatpush1.msra.mxu0 0.0
      %684 = vmatprep.subr.mxu0 %v579
      %685 = vmatpush1.msra.mxu0 %v578
      %686 = vmatprep.subr.mxu0 %v575
      %687 = vmatpush1.msra.mxu0 %v574
      %688 = vmatprep.subr.mxu0 %v571
      %689 = vmatpush1.msra.mxu0 %v570
      %690 = vmatprep.subr.mxu0 %v567
      %691 = vmatpush1.msra.mxu0 %v566
      %692 = vmatprep.subr.mxu0 0.0
      %693 = vmatpush2.msra.mxu0 0.0
      %694 = vmatprep.subr.mxu0 0.0
      %695 = vmatpush2.msra.mxu0 0.0
      %696 = vmatprep.subr.mxu0 0.0
      %697 = vmatpush2.msra.mxu0 0.0
      %698 = vmatprep.subr.mxu0 0.0
      %699 = vmatpush2.msra.mxu0 0.0
      %700 = vmatprep.subr.mxu0 0.0
      %701 = vmatpush2.msra.mxu0 0.0
      %702 = vmatprep.subr.mxu0 0.0
      %703 = vmatpush2.msra.mxu0 0.0
      %704 = vmatprep.subr.mxu0 0.0
      %705 = vmatpush2.msra.mxu0 0.0
      %706 = vmatprep.subr.mxu0 0.0
      %707 = vmatpush2.msra.mxu0 0.0
      %708 = vmatprep.subr.mxu0 0.0
      %709 = vmatpush2.msra.mxu0 0.0
      %710 = vmatprep.subr.mxu0 0.0
      %711 = vmatpush2.msra.mxu0 0.0
      %712 = vmatprep.subr.mxu0 0.0
      %713 = vmatpush2.msra.mxu0 0.0
      %714 = vmatprep.subr.mxu0 0.0
      %715 = vmatpush2.msra.mxu0 0.0
      %716 = vmatprep.subr.mxu0 0.0
      %717 = vmatpush2.msra.mxu0 0.0
      %718 = vmatprep.subr.mxu0 0.0
      %719 = vmatpush2.msra.mxu0 0.0
      %720 = vmatprep.subr.mxu0 0.0
      %721 = vmatpush2.msra.mxu0 0.0
      %722 = vmatprep.subr.mxu0 0.0
      %723 = vmatpush2.msra.mxu0 0.0
      %724 = vmatprep.mubr.f32.mxu0 0.0
      %725 = vmatmul.mubr.f32.gmra.mxu0 %v587
      %v726 = vpop.f32.mrf.mxu0
      %v727 = vadd.f32 %v583, %v726
      %v728 = vpop.f32.mrf.mxu0
      %v729 = vadd.f32 %v583, %v728
      %730 = vdwg.mxu0
      %731 = vst [vmem:[%s262] sm:$0xff] %v656
      %732 = vst [vmem:[%s262 + $0x8] sm:$0xff] %v658
      %733 = vst [vmem:[%s262 + $0x10] sm:$0xff] %v727
      %734 = vst [vmem:[%s262 + $0x18] sm:$0xff] %v729
      %s735 = scalar_lea.vmem %s252, 16
      %v736 = vld [vmem:[%s735] sm:$0xff]
      %v737 = vld [vmem:[%s735 + $0x8] sm:$0xff]
      %v740 = vcombine.high %v736, %v736
      %v741 = vcombine.high %v737, %v737
      %v742 = vsel %vm313, %v736, 0
      %v744 = vsel %vm313, %v740, 0
      %v746 = vsel %vm313, %v737, 0
      %v748 = vsel %vm313, %v741, 0
      %750 = vmatprep.subr.mxu0 0.0
      %751 = vmatpush1.msra.mxu0 0.0
      %752 = vmatprep.subr.mxu0 0.0
      %753 = vmatpush1.msra.mxu0 0.0
      %754 = vmatprep.subr.mxu0 0.0
      %755 = vmatpush1.msra.mxu0 0.0
      %756 = vmatprep.subr.mxu0 0.0
      %757 = vmatpush1.msra.mxu0 0.0
      %758 = vmatprep.subr.mxu0 0.0
      %759 = vmatpush1.msra.mxu0 0.0
      %760 = vmatprep.subr.mxu0 0.0
      %761 = vmatpush1.msra.mxu0 0.0
      %762 = vmatprep.subr.mxu0 0.0
      %763 = vmatpush1.msra.mxu0 0.0
      %764 = vmatprep.subr.mxu0 0.0
      %765 = vmatpush1.msra.mxu0 0.0
      %766 = vmatprep.subr.mxu0 0.0
      %767 = vmatpush1.msra.mxu0 0.0
      %768 = vmatprep.subr.mxu0 0.0
      %769 = vmatpush1.msra.mxu0 0.0
      %770 = vmatprep.subr.mxu0 0.0
      %771 = vmatpush1.msra.mxu0 0.0
      %772 = vmatprep.subr.mxu0 0.0
      %773 = vmatpush1.msra.mxu0 0.0
      %774 = vmatprep.subr.mxu0 0.0
      %775 = vmatpush1.msra.mxu0 0.0
      %776 = vmatprep.subr.mxu0 0.0
      %777 = vmatpush1.msra.mxu0 0.0
      %778 = vmatprep.subr.mxu0 0.0
      %779 = vmatpush1.msra.mxu0 0.0
      %780 = vmatprep.subr.mxu0 %v744
      %781 = vmatpush1.msra.mxu0 %v742
      %782 = vmatprep.subr.mxu0 0.0
      %783 = vmatpush2.msra.mxu0 0.0
      %784 = vmatprep.subr.mxu0 0.0
      %785 = vmatpush2.msra.mxu0 0.0
      %786 = vmatprep.subr.mxu0 0.0
      %787 = vmatpush2.msra.mxu0 0.0
      %788 = vmatprep.subr.mxu0 0.0
      %789 = vmatpush2.msra.mxu0 0.0
      %790 = vmatprep.subr.mxu0 0.0
      %791 = vmatpush2.msra.mxu0 0.0
      %792 = vmatprep.subr.mxu0 0.0
      %793 = vmatpush2.msra.mxu0 0.0
      %794 = vmatprep.subr.mxu0 0.0
      %795 = vmatpush2.msra.mxu0 0.0
      %796 = vmatprep.subr.mxu0 0.0
      %797 = vmatpush2.msra.mxu0 0.0
      %798 = vmatprep.subr.mxu0 0.0
      %799 = vmatpush2.msra.mxu0 0.0
      %800 = vmatprep.subr.mxu0 0.0
      %801 = vmatpush2.msra.mxu0 0.0
      %802 = vmatprep.subr.mxu0 0.0
      %803 = vmatpush2.msra.mxu0 0.0
      %804 = vmatprep.subr.mxu0 0.0
      %805 = vmatpush2.msra.mxu0 0.0
      %806 = vmatprep.subr.mxu0 0.0
      %807 = vmatpush2.msra.mxu0 0.0
      %808 = vmatprep.subr.mxu0 0.0
      %809 = vmatpush2.msra.mxu0 0.0
      %810 = vmatprep.subr.mxu0 0.0
      %811 = vmatpush2.msra.mxu0 0.0
      %812 = vmatprep.subr.mxu0 0.0
      %813 = vmatpush2.msra.mxu0 0.0
      %814 = vmatprep.mubr.f32.mxu0 0.0
      %815 = vmatmul.mubr.f32.gmra.mxu0 %v302
      %v816 = vpop.f32.mrf.mxu0
      %v817 = vadd.f32 %v279, %v816
      %v818 = vpop.f32.mrf.mxu0
      %v819 = vadd.f32 %v279, %v818
      %820 = vmatprep.mubr.f32.mxu0 0.0
      %821 = vmatmul.mubr.f32.gmra.mxu0 %v305
      %v822 = vpop.f32.mrf.mxu0
      %v823 = vadd.f32 %v284, %v822
      %v824 = vpop.f32.mrf.mxu0
      %v825 = vadd.f32 %v284, %v824
      %826 = vmatprep.mubr.f32.mxu0 0.0
      %827 = vmatmul.mubr.f32.gmra.mxu0 %v308
      %v828 = vpop.f32.mrf.mxu0
      %v829 = vadd.f32 %v289, %v828
      %v830 = vpop.f32.mrf.mxu0
      %v831 = vadd.f32 %v289, %v830
      %832 = vmatprep.mubr.f32.mxu0 0.0
      %833 = vmatmul.mubr.f32.gmra.mxu0 %v311
      %v834 = vpop.f32.mrf.mxu0
      %v835 = vadd.f32 %v294, %v834
      %v836 = vpop.f32.mrf.mxu0
      %v837 = vadd.f32 %v294, %v836
      %838 = vdwg.mxu0
      %839 = vmatprep.subr.mxu0 0.0
      %840 = vmatpush1.msra.mxu0 0.0
      %841 = vmatprep.subr.mxu0 0.0
      %842 = vmatpush1.msra.mxu0 0.0
      %843 = vmatprep.subr.mxu0 0.0
      %844 = vmatpush1.msra.mxu0 0.0
      %845 = vmatprep.subr.mxu0 0.0
      %846 = vmatpush1.msra.mxu0 0.0
      %847 = vmatprep.subr.mxu0 0.0
      %848 = vmatpush1.msra.mxu0 0.0
      %849 = vmatprep.subr.mxu0 0.0
      %850 = vmatpush1.msra.mxu0 0.0
      %851 = vmatprep.subr.mxu0 0.0
      %852 = vmatpush1.msra.mxu0 0.0
      %853 = vmatprep.subr.mxu0 0.0
      %854 = vmatpush1.msra.mxu0 0.0
      %855 = vmatprep.subr.mxu0 0.0
      %856 = vmatpush1.msra.mxu0 0.0
      %857 = vmatprep.subr.mxu0 0.0
      %858 = vmatpush1.msra.mxu0 0.0
      %859 = vmatprep.subr.mxu0 0.0
      %860 = vmatpush1.msra.mxu0 0.0
      %861 = vmatprep.subr.mxu0 0.0
      %862 = vmatpush1.msra.mxu0 0.0
      %863 = vmatprep.subr.mxu0 0.0
      %864 = vmatpush1.msra.mxu0 0.0
      %865 = vmatprep.subr.mxu0 0.0
      %866 = vmatpush1.msra.mxu0 0.0
      %867 = vmatprep.subr.mxu0 0.0
      %868 = vmatpush1.msra.mxu0 0.0
      %869 = vmatprep.subr.mxu0 %v748
      %870 = vmatpush1.msra.mxu0 %v746
      %871 = vmatprep.subr.mxu0 0.0
      %872 = vmatpush2.msra.mxu0 0.0
      %873 = vmatprep.subr.mxu0 0.0
      %874 = vmatpush2.msra.mxu0 0.0
      %875 = vmatprep.subr.mxu0 0.0
      %876 = vmatpush2.msra.mxu0 0.0
      %877 = vmatprep.subr.mxu0 0.0
      %878 = vmatpush2.msra.mxu0 0.0
      %879 = vmatprep.subr.mxu0 0.0
      %880 = vmatpush2.msra.mxu0 0.0
      %881 = vmatprep.subr.mxu0 0.0
      %882 = vmatpush2.msra.mxu0 0.0
      %883 = vmatprep.subr.mxu0 0.0
      %884 = vmatpush2.msra.mxu0 0.0
      %885 = vmatprep.subr.mxu0 0.0
      %886 = vmatpush2.msra.mxu0 0.0
      %887 = vmatprep.subr.mxu0 0.0
      %888 = vmatpush2.msra.mxu0 0.0
      %889 = vmatprep.subr.mxu0 0.0
      %890 = vmatpush2.msra.mxu0 0.0
      %891 = vmatprep.subr.mxu0 0.0
      %892 = vmatpush2.msra.mxu0 0.0
      %893 = vmatprep.subr.mxu0 0.0
      %894 = vmatpush2.msra.mxu0 0.0
      %895 = vmatprep.subr.mxu0 0.0
      %896 = vmatpush2.msra.mxu0 0.0
      %897 = vmatprep.subr.mxu0 0.0
      %898 = vmatpush2.msra.mxu0 0.0
      %899 = vmatprep.subr.mxu0 0.0
      %900 = vmatpush2.msra.mxu0 0.0
      %901 = vmatprep.subr.mxu0 0.0
      %902 = vmatpush2.msra.mxu0 0.0
      %903 = vmatprep.mubr.f32.mxu0 0.0
      %904 = vmatmul.mubr.f32.gmra.mxu0 %v302
      %v905 = vpop.f32.mrf.mxu0
      %v906 = vadd.f32 %v279, %v905
      %v907 = vpop.f32.mrf.mxu0
      %v908 = vadd.f32 %v279, %v907
      %909 = vmatprep.mubr.f32.mxu0 0.0
      %910 = vmatmul.mubr.f32.gmra.mxu0 %v305
      %v911 = vpop.f32.mrf.mxu0
      %v912 = vadd.f32 %v284, %v911
      %v913 = vpop.f32.mrf.mxu0
      %v914 = vadd.f32 %v284, %v913
      %915 = vmatprep.mubr.f32.mxu0 0.0
      %916 = vmatmul.mubr.f32.gmra.mxu0 %v308
      %v917 = vpop.f32.mrf.mxu0
      %v918 = vadd.f32 %v289, %v917
      %v919 = vpop.f32.mrf.mxu0
      %v920 = vadd.f32 %v289, %v919
      %921 = vmatprep.mubr.f32.mxu0 0.0
      %922 = vmatmul.mubr.f32.gmra.mxu0 %v311
      %v923 = vpop.f32.mrf.mxu0
      %v924 = vadd.f32 %v294, %v923
      %v925 = vpop.f32.mrf.mxu0
      %v926 = vadd.f32 %v294, %v925
      %927 = vdwg.mxu0
      %v928 = vmul.f32 %v817, 0.5
      %v929 = vmul.f32 %v819, 0.5
      %v930 = vmul.f32 %v906, 0.5
      %v931 = vmul.f32 %v908, 0.5
      %v932 = vmul.f32 %v823, 0.5
      %v933 = vmul.f32 %v825, 0.5
      %v934 = vmul.f32 %v912, 0.5
      %v935 = vmul.f32 %v914, 0.5
      %v936 = vmul.f32 %v829, 0.5
      %v937 = vmul.f32 %v831, 0.5
      %v938 = vmul.f32 %v918, 0.5
      %v939 = vmul.f32 %v920, 0.5
      %v940 = vmul.f32 %v835, 0.5
      %v941 = vmul.f32 %v837, 0.5
      %v942 = vmul.f32 %v924, 0.5
      %v943 = vmul.f32 %v926, 0.5
      %v944 = vmul.f32 %v817, 0.70710677
      %v945 = vmul.f32 %v819, 0.70710677
      %v946 = vmul.f32 %v906, 0.70710677
      %v947 = vmul.f32 %v908, 0.70710677
      %v948 = vmul.f32 %v823, 0.70710677
      %v949 = vmul.f32 %v825, 0.70710677
      %v950 = vmul.f32 %v912, 0.70710677
      %v951 = vmul.f32 %v914, 0.70710677
      %v952 = vmul.f32 %v829, 0.70710677
      %v953 = vmul.f32 %v831, 0.70710677
      %v954 = vmul.f32 %v918, 0.70710677
      %v955 = vmul.f32 %v920, 0.70710677
      %v956 = vmul.f32 %v835, 0.70710677
      %v957 = vmul.f32 %v837, 0.70710677
      %v958 = vmul.f32 %v924, 0.70710677
      %v959 = vmul.f32 %v926, 0.70710677
      %v960 = verf.f32.pop %v944
      %v961 = verf.f32.pop %v945
      %v962 = verf.f32.pop %v946
      %v963 = verf.f32.pop %v947
      %v964 = verf.f32.pop %v948
      %v965 = verf.f32.pop %v949
      %v966 = verf.f32.pop %v950
      %v967 = verf.f32.pop %v951
      %v968 = verf.f32.pop %v952
      %v969 = verf.f32.pop %v953
      %v970 = verf.f32.pop %v954
      %v971 = verf.f32.pop %v955
      %v972 = verf.f32.pop %v956
      %v973 = verf.f32.pop %v957
      %v974 = verf.f32.pop %v958
      %v975 = verf.f32.pop %v959
      %v976 = vadd.f32 %v960, 1.0
      %v977 = vadd.f32 %v961, 1.0
      %v978 = vadd.f32 %v962, 1.0
      %v979 = vadd.f32 %v963, 1.0
      %v980 = vadd.f32 %v964, 1.0
      %v981 = vadd.f32 %v965, 1.0
      %v982 = vadd.f32 %v966, 1.0
      %v983 = vadd.f32 %v967, 1.0
      %v984 = vadd.f32 %v968, 1.0
      %v985 = vadd.f32 %v969, 1.0
      %v986 = vadd.f32 %v970, 1.0
      %v987 = vadd.f32 %v971, 1.0
      %v988 = vadd.f32 %v972, 1.0
      %v989 = vadd.f32 %v973, 1.0
      %v990 = vadd.f32 %v974, 1.0
      %v991 = vadd.f32 %v975, 1.0
      %v992 = vmul.f32 %v928, %v976
      %v993 = vmul.f32 %v929, %v977
      %v994 = vmul.f32 %v930, %v978
      %v995 = vmul.f32 %v931, %v979
      %v996 = vmul.f32 %v932, %v980
      %v997 = vmul.f32 %v933, %v981
      %v998 = vmul.f32 %v934, %v982
      %v999 = vmul.f32 %v935, %v983
      %v1000 = vmul.f32 %v936, %v984
      %v1001 = vmul.f32 %v937, %v985
      %v1002 = vmul.f32 %v938, %v986
      %v1003 = vmul.f32 %v939, %v987
      %v1004 = vmul.f32 %v940, %v988
      %v1005 = vmul.f32 %v941, %v989
      %v1006 = vmul.f32 %v942, %v990
      %v1007 = vmul.f32 %v943, %v991
      %1008 = vmatprep.subr.mxu0 0.0
      %1009 = vmatpush1.msra.mxu0 0.0
      %1010 = vmatprep.subr.mxu0 0.0
      %1011 = vmatpush1.msra.mxu0 0.0
      %1012 = vmatprep.subr.mxu0 0.0
      %1013 = vmatpush1.msra.mxu0 0.0
      %1014 = vmatprep.subr.mxu0 0.0
      %1015 = vmatpush1.msra.mxu0 0.0
      %1016 = vmatprep.subr.mxu0 0.0
      %1017 = vmatpush1.msra.mxu0 0.0
      %1018 = vmatprep.subr.mxu0 0.0
      %1019 = vmatpush1.msra.mxu0 0.0
      %1020 = vmatprep.subr.mxu0 0.0
      %1021 = vmatpush1.msra.mxu0 0.0
      %1022 = vmatprep.subr.mxu0 0.0
      %1023 = vmatpush1.msra.mxu0 0.0
      %1024 = vmatprep.subr.mxu0 0.0
      %1025 = vmatpush1.msra.mxu0 0.0
      %1026 = vmatprep.subr.mxu0 0.0
      %1027 = vmatpush1.msra.mxu0 0.0
      %1028 = vmatprep.subr.mxu0 0.0
      %1029 = vmatpush1.msra.mxu0 0.0
      %1030 = vmatprep.subr.mxu0 0.0
      %1031 = vmatpush1.msra.mxu0 0.0
      %1032 = vmatprep.subr.mxu0 %v1005
      %1033 = vmatpush1.msra.mxu0 %v1004
      %1034 = vmatprep.subr.mxu0 %v1001
      %1035 = vmatpush1.msra.mxu0 %v1000
      %1036 = vmatprep.subr.mxu0 %v997
      %1037 = vmatpush1.msra.mxu0 %v996
      %1038 = vmatprep.subr.mxu0 %v993
      %1039 = vmatpush1.msra.mxu0 %v992
      %1040 = vmatprep.subr.mxu0 0.0
      %1041 = vmatpush2.msra.mxu0 0.0
      %1042 = vmatprep.subr.mxu0 0.0
      %1043 = vmatpush2.msra.mxu0 0.0
      %1044 = vmatprep.subr.mxu0 0.0
      %1045 = vmatpush2.msra.mxu0 0.0
      %1046 = vmatprep.subr.mxu0 0.0
      %1047 = vmatpush2.msra.mxu0 0.0
      %1048 = vmatprep.subr.mxu0 0.0
      %1049 = vmatpush2.msra.mxu0 0.0
      %1050 = vmatprep.subr.mxu0 0.0
      %1051 = vmatpush2.msra.mxu0 0.0
      %1052 = vmatprep.subr.mxu0 0.0
      %1053 = vmatpush2.msra.mxu0 0.0
      %1054 = vmatprep.subr.mxu0 0.0
      %1055 = vmatpush2.msra.mxu0 0.0
      %1056 = vmatprep.subr.mxu0 0.0
      %1057 = vmatpush2.msra.mxu0 0.0
      %1058 = vmatprep.subr.mxu0 0.0
      %1059 = vmatpush2.msra.mxu0 0.0
      %1060 = vmatprep.subr.mxu0 0.0
      %1061 = vmatpush2.msra.mxu0 0.0
      %1062 = vmatprep.subr.mxu0 0.0
      %1063 = vmatpush2.msra.mxu0 0.0
      %1064 = vmatprep.subr.mxu0 0.0
      %1065 = vmatpush2.msra.mxu0 0.0
      %1066 = vmatprep.subr.mxu0 0.0
      %1067 = vmatpush2.msra.mxu0 0.0
      %1068 = vmatprep.subr.mxu0 0.0
      %1069 = vmatpush2.msra.mxu0 0.0
      %1070 = vmatprep.subr.mxu0 0.0
      %1071 = vmatpush2.msra.mxu0 0.0
      %1072 = vmatprep.mubr.f32.mxu0 0.0
      %1073 = vmatmul.mubr.f32.gmra.mxu0 %v587
      %v1074 = vpop.f32.mrf.mxu0
      %v1075 = vadd.f32 %v583, %v1074
      %v1076 = vpop.f32.mrf.mxu0
      %v1077 = vadd.f32 %v583, %v1076
      %1078 = vdwg.mxu0
      %1079 = vmatprep.subr.mxu0 0.0
      %1080 = vmatpush1.msra.mxu0 0.0
      %1081 = vmatprep.subr.mxu0 0.0
      %1082 = vmatpush1.msra.mxu0 0.0
      %1083 = vmatprep.subr.mxu0 0.0
      %1084 = vmatpush1.msra.mxu0 0.0
      %1085 = vmatprep.subr.mxu0 0.0
      %1086 = vmatpush1.msra.mxu0 0.0
      %1087 = vmatprep.subr.mxu0 0.0
      %1088 = vmatpush1.msra.mxu0 0.0
      %1089 = vmatprep.subr.mxu0 0.0
      %1090 = vmatpush1.msra.mxu0 0.0
      %1091 = vmatprep.subr.mxu0 0.0
      %1092 = vmatpush1.msra.mxu0 0.0
      %1093 = vmatprep.subr.mxu0 0.0
      %1094 = vmatpush1.msra.mxu0 0.0
      %1095 = vmatprep.subr.mxu0 0.0
      %1096 = vmatpush1.msra.mxu0 0.0
      %1097 = vmatprep.subr.mxu0 0.0
      %1098 = vmatpush1.msra.mxu0 0.0
      %1099 = vmatprep.subr.mxu0 0.0
      %1100 = vmatpush1.msra.mxu0 0.0
      %1101 = vmatprep.subr.mxu0 0.0
      %1102 = vmatpush1.msra.mxu0 0.0
      %1103 = vmatprep.subr.mxu0 %v1007
      %1104 = vmatpush1.msra.mxu0 %v1006
      %1105 = vmatprep.subr.mxu0 %v1003
      %1106 = vmatpush1.msra.mxu0 %v1002
      %1107 = vmatprep.subr.mxu0 %v999
      %1108 = vmatpush1.msra.mxu0 %v998
      %1109 = vmatprep.subr.mxu0 %v995
      %1110 = vmatpush1.msra.mxu0 %v994
      %1111 = vmatprep.subr.mxu0 0.0
      %1112 = vmatpush2.msra.mxu0 0.0
      %1113 = vmatprep.subr.mxu0 0.0
      %1114 = vmatpush2.msra.mxu0 0.0
      %1115 = vmatprep.subr.mxu0 0.0
      %1116 = vmatpush2.msra.mxu0 0.0
      %1117 = vmatprep.subr.mxu0 0.0
      %1118 = vmatpush2.msra.mxu0 0.0
      %1119 = vmatprep.subr.mxu0 0.0
      %1120 = vmatpush2.msra.mxu0 0.0
      %1121 = vmatprep.subr.mxu0 0.0
      %1122 = vmatpush2.msra.mxu0 0.0
      %1123 = vmatprep.subr.mxu0 0.0
      %1124 = vmatpush2.msra.mxu0 0.0
      %1125 = vmatprep.subr.mxu0 0.0
      %1126 = vmatpush2.msra.mxu0 0.0
      %1127 = vmatprep.subr.mxu0 0.0
      %1128 = vmatpush2.msra.mxu0 0.0
      %1129 = vmatprep.subr.mxu0 0.0
      %1130 = vmatpush2.msra.mxu0 0.0
      %1131 = vmatprep.subr.mxu0 0.0
      %1132 = vmatpush2.msra.mxu0 0.0
      %1133 = vmatprep.subr.mxu0 0.0
      %1134 = vmatpush2.msra.mxu0 0.0
      %1135 = vmatprep.subr.mxu0 0.0
      %1136 = vmatpush2.msra.mxu0 0.0
      %1137 = vmatprep.subr.mxu0 0.0
      %1138 = vmatpush2.msra.mxu0 0.0
      %1139 = vmatprep.subr.mxu0 0.0
      %1140 = vmatpush2.msra.mxu0 0.0
      %1141 = vmatprep.subr.mxu0 0.0
      %1142 = vmatpush2.msra.mxu0 0.0
      %1143 = vmatprep.mubr.f32.mxu0 0.0
      %1144 = vmatmul.mubr.f32.gmra.mxu0 %v587
      %v1145 = vpop.f32.mrf.mxu0
      %v1146 = vadd.f32 %v583, %v1145
      %v1147 = vpop.f32.mrf.mxu0
      %v1148 = vadd.f32 %v583, %v1147
      %1149 = vdwg.mxu0
      %s1150 = scalar_lea.vmem %s262, 32
      %1151 = vst [vmem:[%s1150] sm:$0xff] %v1075
      %1152 = vst [vmem:[%s1150 + $0x8] sm:$0xff] %v1077
      %1153 = vst [vmem:[%s1150 + $0x10] sm:$0xff] %v1146
      %1154 = vst [vmem:[%s1150 + $0x18] sm:$0xff] %v1148
      %s1155 = scalar_lea.vmem %s252, 32
      %v1156 = vld [vmem:[%s1155] sm:$0xff]
      %v1157 = vld [vmem:[%s1155 + $0x8] sm:$0xff]
      %v1160 = vcombine.high %v1156, %v1156
      %v1161 = vcombine.high %v1157, %v1157
      %v1162 = vsel %vm313, %v1156, 0
      %v1164 = vsel %vm313, %v1160, 0
      %v1166 = vsel %vm313, %v1157, 0
      %v1168 = vsel %vm313, %v1161, 0
      %1170 = vmatprep.subr.mxu0 0.0
      %1171 = vmatpush1.msra.mxu0 0.0
      %1172 = vmatprep.subr.mxu0 0.0
      %1173 = vmatpush1.msra.mxu0 0.0
      %1174 = vmatprep.subr.mxu0 0.0
      %1175 = vmatpush1.msra.mxu0 0.0
      %1176 = vmatprep.subr.mxu0 0.0
      %1177 = vmatpush1.msra.mxu0 0.0
      %1178 = vmatprep.subr.mxu0 0.0
      %1179 = vmatpush1.msra.mxu0 0.0
      %1180 = vmatprep.subr.mxu0 0.0
      %1181 = vmatpush1.msra.mxu0 0.0
      %1182 = vmatprep.subr.mxu0 0.0
      %1183 = vmatpush1.msra.mxu0 0.0
      %1184 = vmatprep.subr.mxu0 0.0
      %1185 = vmatpush1.msra.mxu0 0.0
      %1186 = vmatprep.subr.mxu0 0.0
      %1187 = vmatpush1.msra.mxu0 0.0
      %1188 = vmatprep.subr.mxu0 0.0
      %1189 = vmatpush1.msra.mxu0 0.0
      %1190 = vmatprep.subr.mxu0 0.0
      %1191 = vmatpush1.msra.mxu0 0.0
      %1192 = vmatprep.subr.mxu0 0.0
      %1193 = vmatpush1.msra.mxu0 0.0
      %1194 = vmatprep.subr.mxu0 0.0
      %1195 = vmatpush1.msra.mxu0 0.0
      %1196 = vmatprep.subr.mxu0 0.0
      %1197 = vmatpush1.msra.mxu0 0.0
      %1198 = vmatprep.subr.mxu0 0.0
      %1199 = vmatpush1.msra.mxu0 0.0
      %1200 = vmatprep.subr.mxu0 %v1164
      %1201 = vmatpush1.msra.mxu0 %v1162
      %1202 = vmatprep.subr.mxu0 0.0
      %1203 = vmatpush2.msra.mxu0 0.0
      %1204 = vmatprep.subr.mxu0 0.0
      %1205 = vmatpush2.msra.mxu0 0.0
      %1206 = vmatprep.subr.mxu0 0.0
      %1207 = vmatpush2.msra.mxu0 0.0
      %1208 = vmatprep.subr.mxu0 0.0
      %1209 = vmatpush2.msra.mxu0 0.0
      %1210 = vmatprep.subr.mxu0 0.0
      %1211 = vmatpush2.msra.mxu0 0.0
      %1212 = vmatprep.subr.mxu0 0.0
      %1213 = vmatpush2.msra.mxu0 0.0
      %1214 = vmatprep.subr.mxu0 0.0
      %1215 = vmatpush2.msra.mxu0 0.0
      %1216 = vmatprep.subr.mxu0 0.0
      %1217 = vmatpush2.msra.mxu0 0.0
      %1218 = vmatprep.subr.mxu0 0.0
      %1219 = vmatpush2.msra.mxu0 0.0
      %1220 = vmatprep.subr.mxu0 0.0
      %1221 = vmatpush2.msra.mxu0 0.0
      %1222 = vmatprep.subr.mxu0 0.0
      %1223 = vmatpush2.msra.mxu0 0.0
      %1224 = vmatprep.subr.mxu0 0.0
      %1225 = vmatpush2.msra.mxu0 0.0
      %1226 = vmatprep.subr.mxu0 0.0
      %1227 = vmatpush2.msra.mxu0 0.0
      %1228 = vmatprep.subr.mxu0 0.0
      %1229 = vmatpush2.msra.mxu0 0.0
      %1230 = vmatprep.subr.mxu0 0.0
      %1231 = vmatpush2.msra.mxu0 0.0
      %1232 = vmatprep.subr.mxu0 0.0
      %1233 = vmatpush2.msra.mxu0 0.0
      %1234 = vmatprep.mubr.f32.mxu0 0.0
      %1235 = vmatmul.mubr.f32.gmra.mxu0 %v302
      %v1236 = vpop.f32.mrf.mxu0
      %v1237 = vadd.f32 %v279, %v1236
      %v1238 = vpop.f32.mrf.mxu0
      %v1239 = vadd.f32 %v279, %v1238
      %1240 = vmatprep.mubr.f32.mxu0 0.0
      %1241 = vmatmul.mubr.f32.gmra.mxu0 %v305
      %v1242 = vpop.f32.mrf.mxu0
      %v1243 = vadd.f32 %v284, %v1242
      %v1244 = vpop.f32.mrf.mxu0
      %v1245 = vadd.f32 %v284, %v1244
      %1246 = vmatprep.mubr.f32.mxu0 0.0
      %1247 = vmatmul.mubr.f32.gmra.mxu0 %v308
      %v1248 = vpop.f32.mrf.mxu0
      %v1249 = vadd.f32 %v289, %v1248
      %v1250 = vpop.f32.mrf.mxu0
      %v1251 = vadd.f32 %v289, %v1250
      %1252 = vmatprep.mubr.f32.mxu0 0.0
      %1253 = vmatmul.mubr.f32.gmra.mxu0 %v311
      %v1254 = vpop.f32.mrf.mxu0
      %v1255 = vadd.f32 %v294, %v1254
      %v1256 = vpop.f32.mrf.mxu0
      %v1257 = vadd.f32 %v294, %v1256
      %1258 = vdwg.mxu0
      %1259 = vmatprep.subr.mxu0 0.0
      %1260 = vmatpush1.msra.mxu0 0.0
      %1261 = vmatprep.subr.mxu0 0.0
      %1262 = vmatpush1.msra.mxu0 0.0
      %1263 = vmatprep.subr.mxu0 0.0
      %1264 = vmatpush1.msra.mxu0 0.0
      %1265 = vmatprep.subr.mxu0 0.0
      %1266 = vmatpush1.msra.mxu0 0.0
      %1267 = vmatprep.subr.mxu0 0.0
      %1268 = vmatpush1.msra.mxu0 0.0
      %1269 = vmatprep.subr.mxu0 0.0
      %1270 = vmatpush1.msra.mxu0 0.0
      %1271 = vmatprep.subr.mxu0 0.0
      %1272 = vmatpush1.msra.mxu0 0.0
      %1273 = vmatprep.subr.mxu0 0.0
      %1274 = vmatpush1.msra.mxu0 0.0
      %1275 = vmatprep.subr.mxu0 0.0
      %1276 = vmatpush1.msra.mxu0 0.0
      %1277 = vmatprep.subr.mxu0 0.0
      %1278 = vmatpush1.msra.mxu0 0.0
      %1279 = vmatprep.subr.mxu0 0.0
      %1280 = vmatpush1.msra.mxu0 0.0
      %1281 = vmatprep.subr.mxu0 0.0
      %1282 = vmatpush1.msra.mxu0 0.0
      %1283 = vmatprep.subr.mxu0 0.0
      %1284 = vmatpush1.msra.mxu0 0.0
      %1285 = vmatprep.subr.mxu0 0.0
      %1286 = vmatpush1.msra.mxu0 0.0
      %1287 = vmatprep.subr.mxu0 0.0
      %1288 = vmatpush1.msra.mxu0 0.0
      %1289 = vmatprep.subr.mxu0 %v1168
      %1290 = vmatpush1.msra.mxu0 %v1166
      %1291 = vmatprep.subr.mxu0 0.0
      %1292 = vmatpush2.msra.mxu0 0.0
      %1293 = vmatprep.subr.mxu0 0.0
      %1294 = vmatpush2.msra.mxu0 0.0
      %1295 = vmatprep.subr.mxu0 0.0
      %1296 = vmatpush2.msra.mxu0 0.0
      %1297 = vmatprep.subr.mxu0 0.0
      %1298 = vmatpush2.msra.mxu0 0.0
      %1299 = vmatprep.subr.mxu0 0.0
      %1300 = vmatpush2.msra.mxu0 0.0
      %1301 = vmatprep.subr.mxu0 0.0
      %1302 = vmatpush2.msra.mxu0 0.0
      %1303 = vmatprep.subr.mxu0 0.0
      %1304 = vmatpush2.msra.mxu0 0.0
      %1305 = vmatprep.subr.mxu0 0.0
      %1306 = vmatpush2.msra.mxu0 0.0
      %1307 = vmatprep.subr.mxu0 0.0
      %1308 = vmatpush2.msra.mxu0 0.0
      %1309 = vmatprep.subr.mxu0 0.0
      %1310 = vmatpush2.msra.mxu0 0.0
      %1311 = vmatprep.subr.mxu0 0.0
      %1312 = vmatpush2.msra.mxu0 0.0
      %1313 = vmatprep.subr.mxu0 0.0
      %1314 = vmatpush2.msra.mxu0 0.0
      %1315 = vmatprep.subr.mxu0 0.0
      %1316 = vmatpush2.msra.mxu0 0.0
      %1317 = vmatprep.subr.mxu0 0.0
      %1318 = vmatpush2.msra.mxu0 0.0
      %1319 = vmatprep.subr.mxu0 0.0
      %1320 = vmatpush2.msra.mxu0 0.0
      %1321 = vmatprep.subr.mxu0 0.0
      %1322 = vmatpush2.msra.mxu0 0.0
      %1323 = vmatprep.mubr.f32.mxu0 0.0
      %1324 = vmatmul.mubr.f32.gmra.mxu0 %v302
      %v1325 = vpop.f32.mrf.mxu0
      %v1326 = vadd.f32 %v279, %v1325
      %v1327 = vpop.f32.mrf.mxu0
      %v1328 = vadd.f32 %v279, %v1327
      %1329 = vmatprep.mubr.f32.mxu0 0.0
      %1330 = vmatmul.mubr.f32.gmra.mxu0 %v305
      %v1331 = vpop.f32.mrf.mxu0
      %v1332 = vadd.f32 %v284, %v1331
      %v1333 = vpop.f32.mrf.mxu0
      %v1334 = vadd.f32 %v284, %v1333
      %1335 = vmatprep.mubr.f32.mxu0 0.0
      %1336 = vmatmul.mubr.f32.gmra.mxu0 %v308
      %v1337 = vpop.f32.mrf.mxu0
      %v1338 = vadd.f32 %v289, %v1337
      %v1339 = vpop.f32.mrf.mxu0
      %v1340 = vadd.f32 %v289, %v1339
      %1341 = vmatprep.mubr.f32.mxu0 0.0
      %1342 = vmatmul.mubr.f32.gmra.mxu0 %v311
      %v1343 = vpop.f32.mrf.mxu0
      %v1344 = vadd.f32 %v294, %v1343
      %v1345 = vpop.f32.mrf.mxu0
      %v1346 = vadd.f32 %v294, %v1345
      %1347 = vdwg.mxu0
      %v1348 = vmul.f32 %v1237, 0.5
      %v1349 = vmul.f32 %v1239, 0.5
      %v1350 = vmul.f32 %v1326, 0.5
      %v1351 = vmul.f32 %v1328, 0.5
      %v1352 = vmul.f32 %v1243, 0.5
      %v1353 = vmul.f32 %v1245, 0.5
      %v1354 = vmul.f32 %v1332, 0.5
      %v1355 = vmul.f32 %v1334, 0.5
      %v1356 = vmul.f32 %v1249, 0.5
      %v1357 = vmul.f32 %v1251, 0.5
      %v1358 = vmul.f32 %v1338, 0.5
      %v1359 = vmul.f32 %v1340, 0.5
      %v1360 = vmul.f32 %v1255, 0.5
      %v1361 = vmul.f32 %v1257, 0.5
      %v1362 = vmul.f32 %v1344, 0.5
      %v1363 = vmul.f32 %v1346, 0.5
      %v1364 = vmul.f32 %v1237, 0.70710677
      %v1365 = vmul.f32 %v1239, 0.70710677
      %v1366 = vmul.f32 %v1326, 0.70710677
      %v1367 = vmul.f32 %v1328, 0.70710677
      %v1368 = vmul.f32 %v1243, 0.70710677
      %v1369 = vmul.f32 %v1245, 0.70710677
      %v1370 = vmul.f32 %v1332, 0.70710677
      %v1371 = vmul.f32 %v1334, 0.70710677
      %v1372 = vmul.f32 %v1249, 0.70710677
      %v1373 = vmul.f32 %v1251, 0.70710677
      %v1374 = vmul.f32 %v1338, 0.70710677
      %v1375 = vmul.f32 %v1340, 0.70710677
      %v1376 = vmul.f32 %v1255, 0.70710677
      %v1377 = vmul.f32 %v1257, 0.70710677
      %v1378 = vmul.f32 %v1344, 0.70710677
      %v1379 = vmul.f32 %v1346, 0.70710677
      %v1380 = verf.f32.pop %v1364
      %v1381 = verf.f32.pop %v1365
      %v1382 = verf.f32.pop %v1366
      %v1383 = verf.f32.pop %v1367
      %v1384 = verf.f32.pop %v1368
      %v1385 = verf.f32.pop %v1369
      %v1386 = verf.f32.pop %v1370
      %v1387 = verf.f32.pop %v1371
      %v1388 = verf.f32.pop %v1372
      %v1389 = verf.f32.pop %v1373
      %v1390 = verf.f32.pop %v1374
      %v1391 = verf.f32.pop %v1375
      %v1392 = verf.f32.pop %v1376
      %v1393 = verf.f32.pop %v1377
      %v1394 = verf.f32.pop %v1378
      %v1395 = verf.f32.pop %v1379
      %v1396 = vadd.f32 %v1380, 1.0
      %v1397 = vadd.f32 %v1381, 1.0
      %v1398 = vadd.f32 %v1382, 1.0
      %v1399 = vadd.f32 %v1383, 1.0
      %v1400 = vadd.f32 %v1384, 1.0
      %v1401 = vadd.f32 %v1385, 1.0
      %v1402 = vadd.f32 %v1386, 1.0
      %v1403 = vadd.f32 %v1387, 1.0
      %v1404 = vadd.f32 %v1388, 1.0
      %v1405 = vadd.f32 %v1389, 1.0
      %v1406 = vadd.f32 %v1390, 1.0
      %v1407 = vadd.f32 %v1391, 1.0
      %v1408 = vadd.f32 %v1392, 1.0
      %v1409 = vadd.f32 %v1393, 1.0
      %v1410 = vadd.f32 %v1394, 1.0
      %v1411 = vadd.f32 %v1395, 1.0
      %v1412 = vmul.f32 %v1348, %v1396
      %v1413 = vmul.f32 %v1349, %v1397
      %v1414 = vmul.f32 %v1350, %v1398
      %v1415 = vmul.f32 %v1351, %v1399
      %v1416 = vmul.f32 %v1352, %v1400
      %v1417 = vmul.f32 %v1353, %v1401
      %v1418 = vmul.f32 %v1354, %v1402
      %v1419 = vmul.f32 %v1355, %v1403
      %v1420 = vmul.f32 %v1356, %v1404
      %v1421 = vmul.f32 %v1357, %v1405
      %v1422 = vmul.f32 %v1358, %v1406
      %v1423 = vmul.f32 %v1359, %v1407
      %v1424 = vmul.f32 %v1360, %v1408
      %v1425 = vmul.f32 %v1361, %v1409
      %v1426 = vmul.f32 %v1362, %v1410
      %v1427 = vmul.f32 %v1363, %v1411
      %1428 = vmatprep.subr.mxu0 0.0
      %1429 = vmatpush1.msra.mxu0 0.0
      %1430 = vmatprep.subr.mxu0 0.0
      %1431 = vmatpush1.msra.mxu0 0.0
      %1432 = vmatprep.subr.mxu0 0.0
      %1433 = vmatpush1.msra.mxu0 0.0
      %1434 = vmatprep.subr.mxu0 0.0
      %1435 = vmatpush1.msra.mxu0 0.0
      %1436 = vmatprep.subr.mxu0 0.0
      %1437 = vmatpush1.msra.mxu0 0.0
      %1438 = vmatprep.subr.mxu0 0.0
      %1439 = vmatpush1.msra.mxu0 0.0
      %1440 = vmatprep.subr.mxu0 0.0
      %1441 = vmatpush1.msra.mxu0 0.0
      %1442 = vmatprep.subr.mxu0 0.0
      %1443 = vmatpush1.msra.mxu0 0.0
      %1444 = vmatprep.subr.mxu0 0.0
      %1445 = vmatpush1.msra.mxu0 0.0
      %1446 = vmatprep.subr.mxu0 0.0
      %1447 = vmatpush1.msra.mxu0 0.0
      %1448 = vmatprep.subr.mxu0 0.0
      %1449 = vmatpush1.msra.mxu0 0.0
      %1450 = vmatprep.subr.mxu0 0.0
      %1451 = vmatpush1.msra.mxu0 0.0
      %1452 = vmatprep.subr.mxu0 %v1425
      %1453 = vmatpush1.msra.mxu0 %v1424
      %1454 = vmatprep.subr.mxu0 %v1421
      %1455 = vmatpush1.msra.mxu0 %v1420
      %1456 = vmatprep.subr.mxu0 %v1417
      %1457 = vmatpush1.msra.mxu0 %v1416
      %1458 = vmatprep.subr.mxu0 %v1413
      %1459 = vmatpush1.msra.mxu0 %v1412
      %1460 = vmatprep.subr.mxu0 0.0
      %1461 = vmatpush2.msra.mxu0 0.0
      %1462 = vmatprep.subr.mxu0 0.0
      %1463 = vmatpush2.msra.mxu0 0.0
      %1464 = vmatprep.subr.mxu0 0.0
      %1465 = vmatpush2.msra.mxu0 0.0
      %1466 = vmatprep.subr.mxu0 0.0
      %1467 = vmatpush2.msra.mxu0 0.0
      %1468 = vmatprep.subr.mxu0 0.0
      %1469 = vmatpush2.msra.mxu0 0.0
      %1470 = vmatprep.subr.mxu0 0.0
      %1471 = vmatpush2.msra.mxu0 0.0
      %1472 = vmatprep.subr.mxu0 0.0
      %1473 = vmatpush2.msra.mxu0 0.0
      %1474 = vmatprep.subr.mxu0 0.0
      %1475 = vmatpush2.msra.mxu0 0.0
      %1476 = vmatprep.subr.mxu0 0.0
      %1477 = vmatpush2.msra.mxu0 0.0
      %1478 = vmatprep.subr.mxu0 0.0
      %1479 = vmatpush2.msra.mxu0 0.0
      %1480 = vmatprep.subr.mxu0 0.0
      %1481 = vmatpush2.msra.mxu0 0.0
      %1482 = vmatprep.subr.mxu0 0.0
      %1483 = vmatpush2.msra.mxu0 0.0
      %1484 = vmatprep.subr.mxu0 0.0
      %1485 = vmatpush2.msra.mxu0 0.0
      %1486 = vmatprep.subr.mxu0 0.0
      %1487 = vmatpush2.msra.mxu0 0.0
      %1488 = vmatprep.subr.mxu0 0.0
      %1489 = vmatpush2.msra.mxu0 0.0
      %1490 = vmatprep.subr.mxu0 0.0
      %1491 = vmatpush2.msra.mxu0 0.0
      %1492 = vmatprep.mubr.f32.mxu0 0.0
      %1493 = vmatmul.mubr.f32.gmra.mxu0 %v587
      %v1494 = vpop.f32.mrf.mxu0
      %v1495 = vadd.f32 %v583, %v1494
      %v1496 = vpop.f32.mrf.mxu0
      %v1497 = vadd.f32 %v583, %v1496
      %1498 = vdwg.mxu0
      %1499 = vmatprep.subr.mxu0 0.0
      %1500 = vmatpush1.msra.mxu0 0.0
      %1501 = vmatprep.subr.mxu0 0.0
      %1502 = vmatpush1.msra.mxu0 0.0
      %1503 = vmatprep.subr.mxu0 0.0
      %1504 = vmatpush1.msra.mxu0 0.0
      %1505 = vmatprep.subr.mxu0 0.0
      %1506 = vmatpush1.msra.mxu0 0.0
      %1507 = vmatprep.subr.mxu0 0.0
      %1508 = vmatpush1.msra.mxu0 0.0
      %1509 = vmatprep.subr.mxu0 0.0
      %1510 = vmatpush1.msra.mxu0 0.0
      %1511 = vmatprep.subr.mxu0 0.0
      %1512 = vmatpush1.msra.mxu0 0.0
      %1513 = vmatprep.subr.mxu0 0.0
      %1514 = vmatpush1.msra.mxu0 0.0
      %1515 = vmatprep.subr.mxu0 0.0
      %1516 = vmatpush1.msra.mxu0 0.0
      %1517 = vmatprep.subr.mxu0 0.0
      %1518 = vmatpush1.msra.mxu0 0.0
      %1519 = vmatprep.subr.mxu0 0.0
      %1520 = vmatpush1.msra.mxu0 0.0
      %1521 = vmatprep.subr.mxu0 0.0
      %1522 = vmatpush1.msra.mxu0 0.0
      %1523 = vmatprep.subr.mxu0 %v1427
      %1524 = vmatpush1.msra.mxu0 %v1426
      %1525 = vmatprep.subr.mxu0 %v1423
      %1526 = vmatpush1.msra.mxu0 %v1422
      %1527 = vmatprep.subr.mxu0 %v1419
      %1528 = vmatpush1.msra.mxu0 %v1418
      %1529 = vmatprep.subr.mxu0 %v1415
      %1530 = vmatpush1.msra.mxu0 %v1414
      %1531 = vmatprep.subr.mxu0 0.0
      %1532 = vmatpush2.msra.mxu0 0.0
      %1533 = vmatprep.subr.mxu0 0.0
      %1534 = vmatpush2.msra.mxu0 0.0
      %1535 = vmatprep.subr.mxu0 0.0
      %1536 = vmatpush2.msra.mxu0 0.0
      %1537 = vmatprep.subr.mxu0 0.0
      %1538 = vmatpush2.msra.mxu0 0.0
      %1539 = vmatprep.subr.mxu0 0.0
      %1540 = vmatpush2.msra.mxu0 0.0
      %1541 = vmatprep.subr.mxu0 0.0
      %1542 = vmatpush2.msra.mxu0 0.0
      %1543 = vmatprep.subr.mxu0 0.0
      %1544 = vmatpush2.msra.mxu0 0.0
      %1545 = vmatprep.subr.mxu0 0.0
      %1546 = vmatpush2.msra.mxu0 0.0
      %1547 = vmatprep.subr.mxu0 0.0
      %1548 = vmatpush2.msra.mxu0 0.0
      %1549 = vmatprep.subr.mxu0 0.0
      %1550 = vmatpush2.msra.mxu0 0.0
      %1551 = vmatprep.subr.mxu0 0.0
      %1552 = vmatpush2.msra.mxu0 0.0
      %1553 = vmatprep.subr.mxu0 0.0
      %1554 = vmatpush2.msra.mxu0 0.0
      %1555 = vmatprep.subr.mxu0 0.0
      %1556 = vmatpush2.msra.mxu0 0.0
      %1557 = vmatprep.subr.mxu0 0.0
      %1558 = vmatpush2.msra.mxu0 0.0
      %1559 = vmatprep.subr.mxu0 0.0
      %1560 = vmatpush2.msra.mxu0 0.0
      %1561 = vmatprep.subr.mxu0 0.0
      %1562 = vmatpush2.msra.mxu0 0.0
      %1563 = vmatprep.mubr.f32.mxu0 0.0
      %1564 = vmatmul.mubr.f32.gmra.mxu0 %v587
      %v1565 = vpop.f32.mrf.mxu0
      %v1566 = vadd.f32 %v583, %v1565
      %v1567 = vpop.f32.mrf.mxu0
      %v1568 = vadd.f32 %v583, %v1567
      %1569 = vdwg.mxu0
      %s1570 = scalar_lea.vmem %s262, 64
      %1571 = vst [vmem:[%s1570] sm:$0xff] %v1495
      %1572 = vst [vmem:[%s1570 + $0x8] sm:$0xff] %v1497
      %1573 = vst [vmem:[%s1570 + $0x10] sm:$0xff] %v1566
      %1574 = vst [vmem:[%s1570 + $0x18] sm:$0xff] %v1568
      %s1575 = scalar_lea.vmem %s252, 48
      %v1576 = vld [vmem:[%s1575] sm:$0xff]
      %v1577 = vld [vmem:[%s1575 + $0x8] sm:$0xff]
      %v1580 = vcombine.high %v1576, %v1576
      %v1581 = vcombine.high %v1577, %v1577
      %v1582 = vsel %vm313, %v1576, 0
      %v1584 = vsel %vm313, %v1580, 0
      %v1586 = vsel %vm313, %v1577, 0
      %v1588 = vsel %vm313, %v1581, 0
      %1590 = vmatprep.subr.mxu0 0.0
      %1591 = vmatpush1.msra.mxu0 0.0
      %1592 = vmatprep.subr.mxu0 0.0
      %1593 = vmatpush1.msra.mxu0 0.0
      %1594 = vmatprep.subr.mxu0 0.0
      %1595 = vmatpush1.msra.mxu0 0.0
      %1596 = vmatprep.subr.mxu0 0.0
      %1597 = vmatpush1.msra.mxu0 0.0
      %1598 = vmatprep.subr.mxu0 0.0
      %1599 = vmatpush1.msra.mxu0 0.0
      %1600 = vmatprep.subr.mxu0 0.0
      %1601 = vmatpush1.msra.mxu0 0.0
      %1602 = vmatprep.subr.mxu0 0.0
      %1603 = vmatpush1.msra.mxu0 0.0
      %1604 = vmatprep.subr.mxu0 0.0
      %1605 = vmatpush1.msra.mxu0 0.0
      %1606 = vmatprep.subr.mxu0 0.0
      %1607 = vmatpush1.msra.mxu0 0.0
      %1608 = vmatprep.subr.mxu0 0.0
      %1609 = vmatpush1.msra.mxu0 0.0
      %1610 = vmatprep.subr.mxu0 0.0
      %1611 = vmatpush1.msra.mxu0 0.0
      %1612 = vmatprep.subr.mxu0 0.0
      %1613 = vmatpush1.msra.mxu0 0.0
      %1614 = vmatprep.subr.mxu0 0.0
      %1615 = vmatpush1.msra.mxu0 0.0
      %1616 = vmatprep.subr.mxu0 0.0
      %1617 = vmatpush1.msra.mxu0 0.0
      %1618 = vmatprep.subr.mxu0 0.0
      %1619 = vmatpush1.msra.mxu0 0.0
      %1620 = vmatprep.subr.mxu0 %v1584
      %1621 = vmatpush1.msra.mxu0 %v1582
      %1622 = vmatprep.subr.mxu0 0.0
      %1623 = vmatpush2.msra.mxu0 0.0
      %1624 = vmatprep.subr.mxu0 0.0
      %1625 = vmatpush2.msra.mxu0 0.0
      %1626 = vmatprep.subr.mxu0 0.0
      %1627 = vmatpush2.msra.mxu0 0.0
      %1628 = vmatprep.subr.mxu0 0.0
      %1629 = vmatpush2.msra.mxu0 0.0
      %1630 = vmatprep.subr.mxu0 0.0
      %1631 = vmatpush2.msra.mxu0 0.0
      %1632 = vmatprep.subr.mxu0 0.0
      %1633 = vmatpush2.msra.mxu0 0.0
      %1634 = vmatprep.subr.mxu0 0.0
      %1635 = vmatpush2.msra.mxu0 0.0
      %1636 = vmatprep.subr.mxu0 0.0
      %1637 = vmatpush2.msra.mxu0 0.0
      %1638 = vmatprep.subr.mxu0 0.0
      %1639 = vmatpush2.msra.mxu0 0.0
      %1640 = vmatprep.subr.mxu0 0.0
      %1641 = vmatpush2.msra.mxu0 0.0
      %1642 = vmatprep.subr.mxu0 0.0
      %1643 = vmatpush2.msra.mxu0 0.0
      %1644 = vmatprep.subr.mxu0 0.0
      %1645 = vmatpush2.msra.mxu0 0.0
      %1646 = vmatprep.subr.mxu0 0.0
      %1647 = vmatpush2.msra.mxu0 0.0
      %1648 = vmatprep.subr.mxu0 0.0
      %1649 = vmatpush2.msra.mxu0 0.0
      %1650 = vmatprep.subr.mxu0 0.0
      %1651 = vmatpush2.msra.mxu0 0.0
      %1652 = vmatprep.subr.mxu0 0.0
      %1653 = vmatpush2.msra.mxu0 0.0
      %1654 = vmatprep.mubr.f32.mxu0 0.0
      %1655 = vmatmul.mubr.f32.gmra.mxu0 %v302
      %v1656 = vpop.f32.mrf.mxu0
      %v1657 = vadd.f32 %v279, %v1656
      %v1658 = vpop.f32.mrf.mxu0
      %v1659 = vadd.f32 %v279, %v1658
      %1660 = vmatprep.mubr.f32.mxu0 0.0
      %1661 = vmatmul.mubr.f32.gmra.mxu0 %v305
      %v1662 = vpop.f32.mrf.mxu0
      %v1663 = vadd.f32 %v284, %v1662
      %v1664 = vpop.f32.mrf.mxu0
      %v1665 = vadd.f32 %v284, %v1664
      %1666 = vmatprep.mubr.f32.mxu0 0.0
      %1667 = vmatmul.mubr.f32.gmra.mxu0 %v308
      %v1668 = vpop.f32.mrf.mxu0
      %v1669 = vadd.f32 %v289, %v1668
      %v1670 = vpop.f32.mrf.mxu0
      %v1671 = vadd.f32 %v289, %v1670
      %1672 = vmatprep.mubr.f32.mxu0 0.0
      %1673 = vmatmul.mubr.f32.gmra.mxu0 %v311
      %v1674 = vpop.f32.mrf.mxu0
      %v1675 = vadd.f32 %v294, %v1674
      %v1676 = vpop.f32.mrf.mxu0
      %v1677 = vadd.f32 %v294, %v1676
      %1678 = vdwg.mxu0
      %1679 = vmatprep.subr.mxu0 0.0
      %1680 = vmatpush1.msra.mxu0 0.0
      %1681 = vmatprep.subr.mxu0 0.0
      %1682 = vmatpush1.msra.mxu0 0.0
      %1683 = vmatprep.subr.mxu0 0.0
      %1684 = vmatpush1.msra.mxu0 0.0
      %1685 = vmatprep.subr.mxu0 0.0
      %1686 = vmatpush1.msra.mxu0 0.0
      %1687 = vmatprep.subr.mxu0 0.0
      %1688 = vmatpush1.msra.mxu0 0.0
      %1689 = vmatprep.subr.mxu0 0.0
      %1690 = vmatpush1.msra.mxu0 0.0
      %1691 = vmatprep.subr.mxu0 0.0
      %1692 = vmatpush1.msra.mxu0 0.0
      %1693 = vmatprep.subr.mxu0 0.0
      %1694 = vmatpush1.msra.mxu0 0.0
      %1695 = vmatprep.subr.mxu0 0.0
      %1696 = vmatpush1.msra.mxu0 0.0
      %1697 = vmatprep.subr.mxu0 0.0
      %1698 = vmatpush1.msra.mxu0 0.0
      %1699 = vmatprep.subr.mxu0 0.0
      %1700 = vmatpush1.msra.mxu0 0.0
      %1701 = vmatprep.subr.mxu0 0.0
      %1702 = vmatpush1.msra.mxu0 0.0
      %1703 = vmatprep.subr.mxu0 0.0
      %1704 = vmatpush1.msra.mxu0 0.0
      %1705 = vmatprep.subr.mxu0 0.0
      %1706 = vmatpush1.msra.mxu0 0.0
      %1707 = vmatprep.subr.mxu0 0.0
      %1708 = vmatpush1.msra.mxu0 0.0
      %1709 = vmatprep.subr.mxu0 %v1588
      %1710 = vmatpush1.msra.mxu0 %v1586
      %1711 = vmatprep.subr.mxu0 0.0
      %1712 = vmatpush2.msra.mxu0 0.0
      %1713 = vmatprep.subr.mxu0 0.0
      %1714 = vmatpush2.msra.mxu0 0.0
      %1715 = vmatprep.subr.mxu0 0.0
      %1716 = vmatpush2.msra.mxu0 0.0
      %1717 = vmatprep.subr.mxu0 0.0
      %1718 = vmatpush2.msra.mxu0 0.0
      %1719 = vmatprep.subr.mxu0 0.0
      %1720 = vmatpush2.msra.mxu0 0.0
      %1721 = vmatprep.subr.mxu0 0.0
      %1722 = vmatpush2.msra.mxu0 0.0
      %1723 = vmatprep.subr.mxu0 0.0
      %1724 = vmatpush2.msra.mxu0 0.0
      %1725 = vmatprep.subr.mxu0 0.0
      %1726 = vmatpush2.msra.mxu0 0.0
      %1727 = vmatprep.subr.mxu0 0.0
      %1728 = vmatpush2.msra.mxu0 0.0
      %1729 = vmatprep.subr.mxu0 0.0
      %1730 = vmatpush2.msra.mxu0 0.0
      %1731 = vmatprep.subr.mxu0 0.0
      %1732 = vmatpush2.msra.mxu0 0.0
      %1733 = vmatprep.subr.mxu0 0.0
      %1734 = vmatpush2.msra.mxu0 0.0
      %1735 = vmatprep.subr.mxu0 0.0
      %1736 = vmatpush2.msra.mxu0 0.0
      %1737 = vmatprep.subr.mxu0 0.0
      %1738 = vmatpush2.msra.mxu0 0.0
      %1739 = vmatprep.subr.mxu0 0.0
      %1740 = vmatpush2.msra.mxu0 0.0
      %1741 = vmatprep.subr.mxu0 0.0
      %1742 = vmatpush2.msra.mxu0 0.0
      %1743 = vmatprep.mubr.f32.mxu0 0.0
      %1744 = vmatmul.mubr.f32.gmra.mxu0 %v302
      %v1745 = vpop.f32.mrf.mxu0
      %v1746 = vadd.f32 %v279, %v1745
      %v1747 = vpop.f32.mrf.mxu0
      %v1748 = vadd.f32 %v279, %v1747
      %1749 = vmatprep.mubr.f32.mxu0 0.0
      %1750 = vmatmul.mubr.f32.gmra.mxu0 %v305
      %v1751 = vpop.f32.mrf.mxu0
      %v1752 = vadd.f32 %v284, %v1751
      %v1753 = vpop.f32.mrf.mxu0
      %v1754 = vadd.f32 %v284, %v1753
      %1755 = vmatprep.mubr.f32.mxu0 0.0
      %1756 = vmatmul.mubr.f32.gmra.mxu0 %v308
      %v1757 = vpop.f32.mrf.mxu0
      %v1758 = vadd.f32 %v289, %v1757
      %v1759 = vpop.f32.mrf.mxu0
      %v1760 = vadd.f32 %v289, %v1759
      %1761 = vmatprep.mubr.f32.mxu0 0.0
      %1762 = vmatmul.mubr.f32.gmra.mxu0 %v311
      %v1763 = vpop.f32.mrf.mxu0
      %v1764 = vadd.f32 %v294, %v1763
      %v1765 = vpop.f32.mrf.mxu0
      %v1766 = vadd.f32 %v294, %v1765
      %1767 = vdwg.mxu0
      %v1768 = vmul.f32 %v1657, 0.5
      %v1769 = vmul.f32 %v1659, 0.5
      %v1770 = vmul.f32 %v1746, 0.5
      %v1771 = vmul.f32 %v1748, 0.5
      %v1772 = vmul.f32 %v1663, 0.5
      %v1773 = vmul.f32 %v1665, 0.5
      %v1774 = vmul.f32 %v1752, 0.5
      %v1775 = vmul.f32 %v1754, 0.5
      %v1776 = vmul.f32 %v1669, 0.5
      %v1777 = vmul.f32 %v1671, 0.5
      %v1778 = vmul.f32 %v1758, 0.5
      %v1779 = vmul.f32 %v1760, 0.5
      %v1780 = vmul.f32 %v1675, 0.5
      %v1781 = vmul.f32 %v1677, 0.5
      %v1782 = vmul.f32 %v1764, 0.5
      %v1783 = vmul.f32 %v1766, 0.5
      %v1784 = vmul.f32 %v1657, 0.70710677
      %v1785 = vmul.f32 %v1659, 0.70710677
      %v1786 = vmul.f32 %v1746, 0.70710677
      %v1787 = vmul.f32 %v1748, 0.70710677
      %v1788 = vmul.f32 %v1663, 0.70710677
      %v1789 = vmul.f32 %v1665, 0.70710677
      %v1790 = vmul.f32 %v1752, 0.70710677
      %v1791 = vmul.f32 %v1754, 0.70710677
      %v1792 = vmul.f32 %v1669, 0.70710677
      %v1793 = vmul.f32 %v1671, 0.70710677
      %v1794 = vmul.f32 %v1758, 0.70710677
      %v1795 = vmul.f32 %v1760, 0.70710677
      %v1796 = vmul.f32 %v1675, 0.70710677
      %v1797 = vmul.f32 %v1677, 0.70710677
      %v1798 = vmul.f32 %v1764, 0.70710677
      %v1799 = vmul.f32 %v1766, 0.70710677
      %v1800 = verf.f32.pop %v1784
      %v1801 = verf.f32.pop %v1785
      %v1802 = verf.f32.pop %v1786
      %v1803 = verf.f32.pop %v1787
      %v1804 = verf.f32.pop %v1788
      %v1805 = verf.f32.pop %v1789
      %v1806 = verf.f32.pop %v1790
      %v1807 = verf.f32.pop %v1791
      %v1808 = verf.f32.pop %v1792
      %v1809 = verf.f32.pop %v1793
      %v1810 = verf.f32.pop %v1794
      %v1811 = verf.f32.pop %v1795
      %v1812 = verf.f32.pop %v1796
      %v1813 = verf.f32.pop %v1797
      %v1814 = verf.f32.pop %v1798
      %v1815 = verf.f32.pop %v1799
      %v1816 = vadd.f32 %v1800, 1.0
      %v1817 = vadd.f32 %v1801, 1.0
      %v1818 = vadd.f32 %v1802, 1.0
      %v1819 = vadd.f32 %v1803, 1.0
      %v1820 = vadd.f32 %v1804, 1.0
      %v1821 = vadd.f32 %v1805, 1.0
      %v1822 = vadd.f32 %v1806, 1.0
      %v1823 = vadd.f32 %v1807, 1.0
      %v1824 = vadd.f32 %v1808, 1.0
      %v1825 = vadd.f32 %v1809, 1.0
      %v1826 = vadd.f32 %v1810, 1.0
      %v1827 = vadd.f32 %v1811, 1.0
      %v1828 = vadd.f32 %v1812, 1.0
      %v1829 = vadd.f32 %v1813, 1.0
      %v1830 = vadd.f32 %v1814, 1.0
      %v1831 = vadd.f32 %v1815, 1.0
      %v1832 = vmul.f32 %v1768, %v1816
      %v1833 = vmul.f32 %v1769, %v1817
      %v1834 = vmul.f32 %v1770, %v1818
      %v1835 = vmul.f32 %v1771, %v1819
      %v1836 = vmul.f32 %v1772, %v1820
      %v1837 = vmul.f32 %v1773, %v1821
      %v1838 = vmul.f32 %v1774, %v1822
      %v1839 = vmul.f32 %v1775, %v1823
      %v1840 = vmul.f32 %v1776, %v1824
      %v1841 = vmul.f32 %v1777, %v1825
      %v1842 = vmul.f32 %v1778, %v1826
      %v1843 = vmul.f32 %v1779, %v1827
      %v1844 = vmul.f32 %v1780, %v1828
      %v1845 = vmul.f32 %v1781, %v1829
      %v1846 = vmul.f32 %v1782, %v1830
      %v1847 = vmul.f32 %v1783, %v1831
      %1848 = vmatprep.subr.mxu0 0.0
      %1849 = vmatpush1.msra.mxu0 0.0
      %1850 = vmatprep.subr.mxu0 0.0
      %1851 = vmatpush1.msra.mxu0 0.0
      %1852 = vmatprep.subr.mxu0 0.0
      %1853 = vmatpush1.msra.mxu0 0.0
      %1854 = vmatprep.subr.mxu0 0.0
      %1855 = vmatpush1.msra.mxu0 0.0
      %1856 = vmatprep.subr.mxu0 0.0
      %1857 = vmatpush1.msra.mxu0 0.0
      %1858 = vmatprep.subr.mxu0 0.0
      %1859 = vmatpush1.msra.mxu0 0.0
      %1860 = vmatprep.subr.mxu0 0.0
      %1861 = vmatpush1.msra.mxu0 0.0
      %1862 = vmatprep.subr.mxu0 0.0
      %1863 = vmatpush1.msra.mxu0 0.0
      %1864 = vmatprep.subr.mxu0 0.0
      %1865 = vmatpush1.msra.mxu0 0.0
      %1866 = vmatprep.subr.mxu0 0.0
      %1867 = vmatpush1.msra.mxu0 0.0
      %1868 = vmatprep.subr.mxu0 0.0
      %1869 = vmatpush1.msra.mxu0 0.0
      %1870 = vmatprep.subr.mxu0 0.0
      %1871 = vmatpush1.msra.mxu0 0.0
      %1872 = vmatprep.subr.mxu0 %v1845
      %1873 = vmatpush1.msra.mxu0 %v1844
      %1874 = vmatprep.subr.mxu0 %v1841
      %1875 = vmatpush1.msra.mxu0 %v1840
      %1876 = vmatprep.subr.mxu0 %v1837
      %1877 = vmatpush1.msra.mxu0 %v1836
      %1878 = vmatprep.subr.mxu0 %v1833
      %1879 = vmatpush1.msra.mxu0 %v1832
      %1880 = vmatprep.subr.mxu0 0.0
      %1881 = vmatpush2.msra.mxu0 0.0
      %1882 = vmatprep.subr.mxu0 0.0
      %1883 = vmatpush2.msra.mxu0 0.0
      %1884 = vmatprep.subr.mxu0 0.0
      %1885 = vmatpush2.msra.mxu0 0.0
      %1886 = vmatprep.subr.mxu0 0.0
      %1887 = vmatpush2.msra.mxu0 0.0
      %1888 = vmatprep.subr.mxu0 0.0
      %1889 = vmatpush2.msra.mxu0 0.0
      %1890 = vmatprep.subr.mxu0 0.0
      %1891 = vmatpush2.msra.mxu0 0.0
      %1892 = vmatprep.subr.mxu0 0.0
      %1893 = vmatpush2.msra.mxu0 0.0
      %1894 = vmatprep.subr.mxu0 0.0
      %1895 = vmatpush2.msra.mxu0 0.0
      %1896 = vmatprep.subr.mxu0 0.0
      %1897 = vmatpush2.msra.mxu0 0.0
      %1898 = vmatprep.subr.mxu0 0.0
      %1899 = vmatpush2.msra.mxu0 0.0
      %1900 = vmatprep.subr.mxu0 0.0
      %1901 = vmatpush2.msra.mxu0 0.0
      %1902 = vmatprep.subr.mxu0 0.0
      %1903 = vmatpush2.msra.mxu0 0.0
      %1904 = vmatprep.subr.mxu0 0.0
      %1905 = vmatpush2.msra.mxu0 0.0
      %1906 = vmatprep.subr.mxu0 0.0
      %1907 = vmatpush2.msra.mxu0 0.0
      %1908 = vmatprep.subr.mxu0 0.0
      %1909 = vmatpush2.msra.mxu0 0.0
      %1910 = vmatprep.subr.mxu0 0.0
      %1911 = vmatpush2.msra.mxu0 0.0
      %1912 = vmatprep.mubr.f32.mxu0 0.0
      %1913 = vmatmul.mubr.f32.gmra.mxu0 %v587
      %v1914 = vpop.f32.mrf.mxu0
      %v1915 = vadd.f32 %v583, %v1914
      %v1916 = vpop.f32.mrf.mxu0
      %v1917 = vadd.f32 %v583, %v1916
      %1918 = vdwg.mxu0
      %1919 = vmatprep.subr.mxu0 0.0
      %1920 = vmatpush1.msra.mxu0 0.0
      %1921 = vmatprep.subr.mxu0 0.0
      %1922 = vmatpush1.msra.mxu0 0.0
      %1923 = vmatprep.subr.mxu0 0.0
      %1924 = vmatpush1.msra.mxu0 0.0
      %1925 = vmatprep.subr.mxu0 0.0
      %1926 = vmatpush1.msra.mxu0 0.0
      %1927 = vmatprep.subr.mxu0 0.0
      %1928 = vmatpush1.msra.mxu0 0.0
      %1929 = vmatprep.subr.mxu0 0.0
      %1930 = vmatpush1.msra.mxu0 0.0
      %1931 = vmatprep.subr.mxu0 0.0
      %1932 = vmatpush1.msra.mxu0 0.0
      %1933 = vmatprep.subr.mxu0 0.0
      %1934 = vmatpush1.msra.mxu0 0.0
      %1935 = vmatprep.subr.mxu0 0.0
      %1936 = vmatpush1.msra.mxu0 0.0
      %1937 = vmatprep.subr.mxu0 0.0
      %1938 = vmatpush1.msra.mxu0 0.0
      %1939 = vmatprep.subr.mxu0 0.0
      %1940 = vmatpush1.msra.mxu0 0.0
      %1941 = vmatprep.subr.mxu0 0.0
      %1942 = vmatpush1.msra.mxu0 0.0
      %1943 = vmatprep.subr.mxu0 %v1847
      %1944 = vmatpush1.msra.mxu0 %v1846
      %1945 = vmatprep.subr.mxu0 %v1843
      %1946 = vmatpush1.msra.mxu0 %v1842
      %1947 = vmatprep.subr.mxu0 %v1839
      %1948 = vmatpush1.msra.mxu0 %v1838
      %1949 = vmatprep.subr.mxu0 %v1835
      %1950 = vmatpush1.msra.mxu0 %v1834
      %1951 = vmatprep.subr.mxu0 0.0
      %1952 = vmatpush2.msra.mxu0 0.0
      %1953 = vmatprep.subr.mxu0 0.0
      %1954 = vmatpush2.msra.mxu0 0.0
      %1955 = vmatprep.subr.mxu0 0.0
      %1956 = vmatpush2.msra.mxu0 0.0
      %1957 = vmatprep.subr.mxu0 0.0
      %1958 = vmatpush2.msra.mxu0 0.0
      %1959 = vmatprep.subr.mxu0 0.0
      %1960 = vmatpush2.msra.mxu0 0.0
      %1961 = vmatprep.subr.mxu0 0.0
      %1962 = vmatpush2.msra.mxu0 0.0
      %1963 = vmatprep.subr.mxu0 0.0
      %1964 = vmatpush2.msra.mxu0 0.0
      %1965 = vmatprep.subr.mxu0 0.0
      %1966 = vmatpush2.msra.mxu0 0.0
      %1967 = vmatprep.subr.mxu0 0.0
      %1968 = vmatpush2.msra.mxu0 0.0
      %1969 = vmatprep.subr.mxu0 0.0
      %1970 = vmatpush2.msra.mxu0 0.0
      %1971 = vmatprep.subr.mxu0 0.0
      %1972 = vmatpush2.msra.mxu0 0.0
      %1973 = vmatprep.subr.mxu0 0.0
      %1974 = vmatpush2.msra.mxu0 0.0
      %1975 = vmatprep.subr.mxu0 0.0
      %1976 = vmatpush2.msra.mxu0 0.0
      %1977 = vmatprep.subr.mxu0 0.0
      %1978 = vmatpush2.msra.mxu0 0.0
      %1979 = vmatprep.subr.mxu0 0.0
      %1980 = vmatpush2.msra.mxu0 0.0
      %1981 = vmatprep.subr.mxu0 0.0
      %1982 = vmatpush2.msra.mxu0 0.0
      %1983 = vmatprep.mubr.f32.mxu0 0.0
      %1984 = vmatmul.mubr.f32.gmra.mxu0 %v587
      %v1985 = vpop.f32.mrf.mxu0
      %v1986 = vadd.f32 %v583, %v1985
      %v1987 = vpop.f32.mrf.mxu0
      %v1988 = vadd.f32 %v583, %v1987
      %1989 = vdwg.mxu0
      %s1990 = scalar_lea.vmem %s262, 96
      %1991 = vst [vmem:[%s1990] sm:$0xff] %v1915
      %1992 = vst [vmem:[%s1990 + $0x8] sm:$0xff] %v1917
      %1993 = vst [vmem:[%s1990 + $0x10] sm:$0xff] %v1986
      %1994 = vst [vmem:[%s1990 + $0x18] sm:$0xff] %v1988
      %s1995 = smul.u32 16, %s21
      %p1996 = scmp.lt.s32.totalorder %s20, 1
      %s1997 = scalar_select %p1996, %s20, 1
      %p1998 = scmp.lt.s32.totalorder %s1995, 15
      %s1999 = scalar_select %p1998, %s1995, 15
      %s2000 = smul.addr %s1997, 16
      %s2001 = sadd.s32 %s1999, %s2000
      %s2002 = smul.addr %s2001, 8
      %s2003 = scalar_lea.vmem %s5, %s2002
      // Predicated region
      $region41: #{projector_forward.1} parent=39 // pred_check
        %p2004 = pneg %p160
      $region42: #{projector_forward.1} parent=39 // pred_check_branch
        %2006 = sbr.rel (%p2004) target = $region44
      $region43: #{projector_forward.1} parent=39 // pred_region
        %s2007 = smul.u32 16, %s21
      $region44: #{projector_forward.1} parent=39 // pred_fallthru
        _
    $region40: #{projector_forward.1} parent=5 // pred_fallthru
      _
    %p2008 = scmp.le.s32.totalorder 2, %s11
    // Predicated region
    $region45: #{projector_forward.1} parent=5 // pred_check
      %p2009 = pneg %p2008
    $region46: #{projector_forward.1} parent=5 // pred_check_branch
      %2011 = sbr.rel (%p2009) target = $region48
    $region47: #{projector_forward.1} parent=5 // pred_region
      %s2012 = ssub.s32 %s11, 2
      // Predicated region
      $region49: #{projector_forward.1} parent=47 // pred_check
        %p2013 = pneg %p166
      $region50: #{projector_forward.1} parent=47 // pred_check_branch
        %2015 = sbr.rel (%p2013) target = $region52
      $region51: #{projector_forward.1} parent=47 // pred_region
        %s2016 = smul.u32 16, %s23
        %p2017 = scmp.lt.s32.totalorder %s22, 1
        %s2018 = scalar_select %p2017, %s22, 1
        %p2019 = scmp.lt.s32.totalorder %s2016, 15
        %s2020 = scalar_select %p2019, %s2016, 15
        %s2021 = smul.addr %s2018, 16
        %s2022 = sadd.s32 %s2020, %s2021
        %s2023 = smul.addr %s2022, 8
        %s2024 = scalar_lea.vmem %s5, %s2023
      $region52: #{projector_forward.1} parent=47 // pred_fallthru
        _
    $region48: #{projector_forward.1} parent=5 // pred_fallthru
      _
  $region6: #{projector_forward.1} parent=0 // loop_footer
    %s15 = sadd.s32 1, %s11
  $region7: #{projector_forward.1} parent=0 // loop_footer_branch
    %10 = sbr.rel target = $region3
  $region8: #{projector_forward.1} parent=0 // loop_exit
    _

</llo_original>
